<compile_context>
chip_gen: v7x
topology: tpu7x:2x2x1
jax: 0.10.0
libtpu: 0.0.40
codegen_flags: <defaults>
</compile_context>

<pallas_src>
import functools

import jax
import jax.numpy as jnp
from jax import lax
from jax.experimental import pallas as pl
from jax.experimental.pallas import tpu as pltpu


def _seq_block(seq_len: int, dtype) -> int:
    """Smallest layout-native sublane slab that contains the CLS row (seq 0)."""
    native = 8 * 4 // jnp.dtype(dtype).itemsize   # 8 for f32, 16 for bf16
    return native if seq_len % native == 0 else seq_len


# ----------------------------------------------------------------------------
# Fused kernel, grid = (Bp // tile_p,):
#   pj == 0 : q_reps = pooler((q_cls + pseudo_cls) / 2)      (linearity)
#   every pj: p_reps[tile] = pooler(p_cls[tile])
#             scores[:, tile] = q_reps @ p_reps[tile].T       (bf16 MXU)
#             online-softmax CE accumulation (m, l, target-logit scratch)
#   last pj : loss = mean(lse - target_logit)  -> SMEM scalar output
# ----------------------------------------------------------------------------
def _dense_fwd_kernel(qh_ref, psh_ref, ph_ref, w_ref, b_ref,
                      q_reps_ref, p_reps_ref, s_ref, loss_ref,
                      q_sc, m_sc, l_sc, t_sc,
                      *, group_size, tile_p, batch_q):
    pj = pl.program_id(0)
    n_p = pl.num_programs(0)

    w = w_ref[...]                           # [Dout, Din] bf16 — resident, reused
    b = b_ref[...]                           # [1, Dout]   f32
    dn = (((1,), (1,)), ((), ()))            # x @ W.T contraction

    @pl.when(pj == 0)
    def _init():
        # Pooler is linear: average CLS rows in f32 first, then ONE matmul.
        q_avg = ((qh_ref[:, 0, :].astype(jnp.float32) +
                  psh_ref[:, 0, :].astype(jnp.float32)) * 0.5
                 ).astype(qh_ref.dtype)                          # [Bq, Din] bf16
        q_reps = lax.dot_general(q_avg, w, dn,
                                 preferred_element_type=jnp.float32) + b
        q_sc[...] = q_reps                                       # [Bq, Dout] f32
        q_reps_ref[...] = q_reps
        m_sc[...] = jnp.full_like(m_sc, -jnp.inf)
        l_sc[...] = jnp.zeros_like(l_sc)
        t_sc[...] = jnp.zeros_like(t_sc)

    # Passage pooler for this Bp tile (each tile is visited exactly once).
    p_cls = ph_ref[:, 0, :]                                      # [tp, Din] bf16
    p_lin = lax.dot_general(p_cls, w, dn,
                            preferred_element_type=jnp.float32) + b   # [tp, Dout]
    p_reps_ref[...] = p_lin

    # scores tile = q_reps @ p_reps_tile.T — bf16 operands, f32 accumulation.
    s = lax.dot_general(q_sc[...].astype(jnp.bfloat16),
                        p_lin.astype(jnp.bfloat16), dn,
                        preferred_element_type=jnp.float32)      # [Bq, tp]
    s_ref[...] = s

    # Online-softmax accumulation of the cross-entropy terms across Bp tiles.
    m_prev = m_sc[...]
    m_new = jnp.maximum(m_prev, jnp.max(s, axis=-1, keepdims=True))
    l_sc[...] = (jnp.exp(m_prev - m_new) * l_sc[...]
                 + jnp.sum(jnp.exp(s - m_new), axis=-1, keepdims=True))
    m_sc[...] = m_new

    # target column (global) = row * group_size; offset by this tile's start.
    row = lax.broadcasted_iota(jnp.int32, s.shape, 0)
    col = lax.broadcasted_iota(jnp.int32, s.shape, 1) + pj * tile_p
    t_sc[...] += jnp.sum(jnp.where(col == row * group_size, s, 0.0),
                         axis=-1, keepdims=True)

    @pl.when(pj == n_p - 1)
    def _finalize():
        lse = m_sc[...] + jnp.log(l_sc[...])                     # [Bq, 1]
        loss_ref[0, 0] = jnp.sum(lse - t_sc[...]) * (1.0 / batch_q)


def dense_model_forward(q_hidden, pseudo_hidden, p_hidden, w, b, group_size,
                        *, tile_p=128):
    """DenseModel.forward (tied LinearPooler path, single device)."""
    Bq, Sq, Din = q_hidden.shape
    Bp, Sp, _ = p_hidden.shape
    Dout = w.shape[0]
    assert w.shape == (Dout, Din)
    assert pseudo_hidden.shape == q_hidden.shape
    # Silent-zero guard from the review: every CE target must be a real column.
    assert (Bq - 1) * group_size < Bp, "CE target column out of range"

    tp = tile_p if (Bp >= tile_p and Bp % tile_p == 0) else Bp
    n_p = Bp // tp

    sblk_q = _seq_block(Sq, q_hidden.dtype)
    sblk_p = _seq_block(Sp, p_hidden.dtype)

    kernel = functools.partial(_dense_fwd_kernel, group_size=group_size,
                               tile_p=tp, batch_q=Bq)

    q_reps, p_reps, scores, loss = pl.pallas_call(
        kernel,
        out_shape=(
            jax.ShapeDtypeStruct((Bq, Dout), jnp.float32),   # q_reps (combined)
            jax.ShapeDtypeStruct((Bp, Dout), jnp.float32),   # p_reps
            jax.ShapeDtypeStruct((Bq, Bp), jnp.float32),     # scores
            jax.ShapeDtypeStruct((1, 1), jnp.float32),       # loss (SMEM)
        ),
        grid=(n_p,),
        in_specs=[
            pl.BlockSpec((Bq, sblk_q, Din), lambda j: (0, 0, 0)),   # q_hidden
            pl.BlockSpec((Bq, sblk_q, Din), lambda j: (0, 0, 0)),   # pseudo
            pl.BlockSpec((tp, sblk_p, Din), lambda j: (j, 0, 0)),   # p_hidden tile
            pl.BlockSpec((Dout, Din), lambda j: (0, 0)),            # W (once)
            pl.BlockSpec((1, Dout), lambda j: (0, 0)),              # b
        ],
        out_specs=(
            pl.BlockSpec((Bq, Dout), lambda j: (0, 0)),             # q_reps
            pl.BlockSpec((tp, Dout), lambda j: (j, 0)),             # p_reps tile
            pl.BlockSpec((Bq, tp), lambda j: (0, j)),               # scores tile
            pl.BlockSpec(memory_space=pltpu.MemorySpace.SMEM),      # loss scalar
        ),
        scratch_shapes=[
            pltpu.VMEM((Bq, Dout), jnp.float32),   # q_reps (resident across tiles)
            pltpu.VMEM((Bq, 1), jnp.float32),      # m (running max)
            pltpu.VMEM((Bq, 1), jnp.float32),      # l (running denom)
            pltpu.VMEM((Bq, 1), jnp.float32),      # target logit
        ],
        compiler_params=pltpu.CompilerParams(
            dimension_semantics=("arbitrary",),     # Bp axis carries the CE reduction
            vmem_limit_bytes=48 * 1024 * 1024),
    )(q_hidden, pseudo_hidden, p_hidden, w, b.reshape(1, Dout))

    return {"loss": loss[0, 0], "scores": scores,
            "q_reps": q_reps, "p_reps": p_reps}


# ----------------------------------------------------------------------------
# Reference in plain JAX (faithful to the PyTorch forward, f32 math)
# ----------------------------------------------------------------------------
def dense_model_ref(q_hidden, pseudo_hidden, p_hidden, w, b, group_size):
    hp = lax.Precision.HIGHEST
    wf = w.astype(jnp.float32)

    def pool(h):
        return jnp.matmul(h[:, 0, :].astype(jnp.float32), wf.T,
                          precision=hp) + b

    q_reps = (pool(q_hidden) + pool(pseudo_hidden)) * 0.5
    p_reps = pool(p_hidden)
    scores = jnp.matmul(q_reps, p_reps.T, precision=hp)
    tgt = jnp.arange(scores.shape[0]) * group_size
    logp = jax.nn.log_softmax(scores, axis=-1)
    loss = -jnp.mean(logp[jnp.arange(scores.shape[0]), tgt])
    return loss, scores, q_reps, p_reps


if __name__ == "__main__":
    key = jax.random.PRNGKey(0)
    k1, k2, k3, k4, k5 = jax.random.split(key, 5)

    # Small, TPU-friendly shapes that still exercise the Bp tiling (2 tiles),
    # the seq-slab restriction (sblk=16 < S=32) and lane-dense score tiles.
    Bq, G, S, Din, Dout = 8, 32, 32, 128, 128
    Bp = Bq * G                                   # 256 passages

    q_hidden = jax.random.normal(k1, (Bq, S, Din),
                                 dtype=jnp.float32).astype(jnp.bfloat16)
    pseudo_hidden = jax.random.normal(k2, (Bq, S, Din),
                                      dtype=jnp.float32).astype(jnp.bfloat16)
    p_hidden = jax.random.normal(k3, (Bp, S, Din),
                                 dtype=jnp.float32).astype(jnp.bfloat16)

    w = (jax.random.normal(k4, (Dout, Din), dtype=jnp.float32)
         * 0.05).astype(jnp.bfloat16)             # tied linear_q == linear_p
    b = jax.random.normal(k5, (Dout,), dtype=jnp.float32) * 0.05

    out = dense_model_forward(q_hidden, pseudo_hidden, p_hidden, w, b, G)
    jax.block_until_ready(out)

    ref_loss, ref_scores, ref_q, ref_p = dense_model_ref(
        q_hidden, pseudo_hidden, p_hidden, w, b, G)

    # Tolerances account for bf16 operands in the scores matmul and the
    # bf16-rounded averaged CLS: absolute score error scales with
    # |q_reps||p_reps| (~2.5 typical), not with near-zero individual entries.
    assert jnp.allclose(out["p_reps"], ref_p, rtol=2e-2, atol=2e-2)
    assert jnp.allclose(out["q_reps"], ref_q, rtol=2e-2, atol=2e-2)
    assert jnp.allclose(out["scores"], ref_scores, rtol=2e-2, atol=6e-2)
    assert jnp.allclose(out["loss"], ref_loss, rtol=2e-2, atol=2e-2)

    print("KERNEL_OK")
</pallas_src>

<mosaic_0001>
module attributes {stable_mosaic.version = 11 : i64} {
  func.func @_dense_fwd_kernel(%arg0: i32, %arg1: memref<8x16x128xbf16, #tpu.memory_space<vmem>>, %arg2: memref<8x16x128xbf16, #tpu.memory_space<vmem>>, %arg3: memref<128x16x128xbf16, #tpu.memory_space<vmem>>, %arg4: memref<128x128xbf16, #tpu.memory_space<vmem>>, %arg5: memref<1x128xf32, #tpu.memory_space<vmem>>, %arg6: memref<8x128xf32, #tpu.memory_space<vmem>>, %arg7: memref<128x128xf32, #tpu.memory_space<vmem>>, %arg8: memref<8x128xf32, #tpu.memory_space<vmem>>, %arg9: memref<1x1xf32, #tpu.memory_space<smem>>, %arg10: memref<8x128xf32, #tpu.memory_space<vmem>>, %arg11: memref<8x1xf32, #tpu.memory_space<vmem>>, %arg12: memref<8x1xf32, #tpu.memory_space<vmem>>, %arg13: memref<8x1xf32, #tpu.memory_space<vmem>>) attributes {dimension_semantics = [#tpu.dimension_semantics<arbitrary>], iteration_bounds = array<i64: 2>, scalar_prefetch = 0 : i64, scratch_operands = 4 : i64, tpu.core_type = #tpu.core_type<tc>, window_params = [{transform_indices = @transform_0, window_bounds = array<i64: 8, 16, 128>}, {transform_indices = @transform_1, window_bounds = array<i64: 8, 16, 128>}, {transform_indices = @transform_2, window_bounds = array<i64: 128, 16, 128>}, {pipeline_mode = #tpu.pipeline_mode<synchronous>, transform_indices = @transform_3, window_bounds = array<i64: 128, 128>}, {pipeline_mode = #tpu.pipeline_mode<synchronous>, transform_indices = @transform_4, window_bounds = array<i64: 1, 128>}, {pipeline_mode = #tpu.pipeline_mode<synchronous>, transform_indices = @transform_5, window_bounds = array<i64: 8, 128>}, {transform_indices = @transform_6, window_bounds = array<i64: 128, 128>}, {transform_indices = @transform_7, window_bounds = array<i64: 8, 128>}, {transform_indices = @transform_8, window_bounds = array<i64: 1, 1>}]} {
    %c0 = arith.constant 0 : index
    %c0_0 = arith.constant 0 : index
    %0 = vector.load %arg4[%c0, %c0_0] : memref<128x128xbf16, #tpu.memory_space<vmem>>, vector<128x128xbf16>
    %c0_1 = arith.constant 0 : index
    %c0_2 = arith.constant 0 : index
    %1 = vector.load %arg5[%c0_1, %c0_2] : memref<1x128xf32, #tpu.memory_space<vmem>>, vector<1x128xf32>
    %c0_i32 = arith.constant 0 : i32
    %2 = arith.cmpi eq, %arg0, %c0_i32 : i32
    %3 = arith.extui %2 : i1 to i32
    %c0_i32_3 = arith.constant 0 : i32
    %4 = arith.cmpi ne, %3, %c0_i32_3 : i32
    scf.if %4 {
      %c0_31 = arith.constant 0 : index
      %c0_32 = arith.constant 0 : index
      %c0_33 = arith.constant 0 : index
      %50 = vector.load %arg1[%c0_31, %c0_32, %c0_33] : memref<8x16x128xbf16, #tpu.memory_space<vmem>>, vector<8x1x128xbf16>
      %51 = vector.shape_cast %50 : vector<8x1x128xbf16> to vector<8x128xbf16>
      %52 = arith.extf %51 : vector<8x128xbf16> to vector<8x128xf32>
      %c0_34 = arith.constant 0 : index
      %c0_35 = arith.constant 0 : index
      %c0_36 = arith.constant 0 : index
      %53 = vector.load %arg2[%c0_34, %c0_35, %c0_36] : memref<8x16x128xbf16, #tpu.memory_space<vmem>>, vector<8x1x128xbf16>
      %54 = vector.shape_cast %53 : vector<8x1x128xbf16> to vector<8x128xbf16>
      %55 = arith.extf %54 : vector<8x128xbf16> to vector<8x128xf32>
      %56 = arith.addf %52, %55 : vector<8x128xf32>
      %cst_37 = arith.constant 5.000000e-01 : f32
      %57 = vector.broadcast %cst_37 : f32 to vector<8x128xf32>
      %58 = arith.mulf %56, %57 : vector<8x128xf32>
      %59 = arith.truncf %58 : vector<8x128xf32> to vector<8x128xbf16>
      %cst_38 = arith.constant dense<0.000000e+00> : vector<8x128xf32>
      %60 = tpu.matmul %59, %0, %cst_38 {dimension_numbers = #tpu.dot_dimension_numbers<[1], [1], [0], [0], [0, 0, 1, 0], [], []>} : vector<8x128xbf16>, vector<128x128xbf16>, vector<8x128xf32> -> vector<8x128xf32>
      %61 = vector.broadcast %1 : vector<1x128xf32> to vector<8x128xf32>
      %62 = arith.addf %60, %61 : vector<8x128xf32>
      %c0_39 = arith.constant 0 : index
      %c0_40 = arith.constant 0 : index
      %63 = vector.load %arg10[%c0_39, %c0_40] : memref<8x128xf32, #tpu.memory_space<vmem>>, vector<8x128xf32>
      tpu.vector_store %arg10[%c0_39, %c0_40], %62 {strides = array<i32>} : memref<8x128xf32, #tpu.memory_space<vmem>>, vector<8x128xf32>,
      %c0_41 = arith.constant 0 : index
      %c0_42 = arith.constant 0 : index
      %64 = vector.load %arg6[%c0_41, %c0_42] : memref<8x128xf32, #tpu.memory_space<vmem>>, vector<8x128xf32>
      tpu.vector_store %arg6[%c0_41, %c0_42], %62 {strides = array<i32>} : memref<8x128xf32, #tpu.memory_space<vmem>>, vector<8x128xf32>,
      %cst_43 = arith.constant 0xFF800000 : f32
      %65 = vector.broadcast %cst_43 : f32 to vector<8x1xf32>
      %c0_44 = arith.constant 0 : index
      %c0_45 = arith.constant 0 : index
      %66 = vector.load %arg11[%c0_44, %c0_45] : memref<8x1xf32, #tpu.memory_space<vmem>>, vector<8x1xf32>
      tpu.vector_store %arg11[%c0_44, %c0_45], %65 {strides = array<i32>} : memref<8x1xf32, #tpu.memory_space<vmem>>, vector<8x1xf32>,
      %cst_46 = arith.constant 0.000000e+00 : f32
      %67 = vector.broadcast %cst_46 : f32 to vector<8x1xf32>
      %c0_47 = arith.constant 0 : index
      %c0_48 = arith.constant 0 : index
      %68 = vector.load %arg12[%c0_47, %c0_48] : memref<8x1xf32, #tpu.memory_space<vmem>>, vector<8x1xf32>
      tpu.vector_store %arg12[%c0_47, %c0_48], %67 {strides = array<i32>} : memref<8x1xf32, #tpu.memory_space<vmem>>, vector<8x1xf32>,
      %cst_49 = arith.constant 0.000000e+00 : f32
      %69 = vector.broadcast %cst_49 : f32 to vector<8x1xf32>
      %c0_50 = arith.constant 0 : index
      %c0_51 = arith.constant 0 : index
      %70 = vector.load %arg13[%c0_50, %c0_51] : memref<8x1xf32, #tpu.memory_space<vmem>>, vector<8x1xf32>
      tpu.vector_store %arg13[%c0_50, %c0_51], %69 {strides = array<i32>} : memref<8x1xf32, #tpu.memory_space<vmem>>, vector<8x1xf32>,
    } else {
    }
    %c0_4 = arith.constant 0 : index
    %c0_5 = arith.constant 0 : index
    %c0_6 = arith.constant 0 : index
    %5 = vector.load %arg3[%c0_4, %c0_5, %c0_6] : memref<128x16x128xbf16, #tpu.memory_space<vmem>>, vector<128x1x128xbf16>
    %6 = vector.shape_cast %5 : vector<128x1x128xbf16> to vector<128x128xbf16>
    %cst = arith.constant dense<0.000000e+00> : vector<128x128xf32>
    %7 = tpu.matmul %6, %0, %cst {dimension_numbers = #tpu.dot_dimension_numbers<[1], [1], [0], [0], [0, 0, 1, 0], [], []>} : vector<128x128xbf16>, vector<128x128xbf16>, vector<128x128xf32> -> vector<128x128xf32>
    %8 = vector.broadcast %1 : vector<1x128xf32> to vector<128x128xf32>
    %9 = arith.addf %7, %8 : vector<128x128xf32>
    %c0_7 = arith.constant 0 : index
    %c0_8 = arith.constant 0 : index
    %10 = vector.load %arg7[%c0_7, %c0_8] : memref<128x128xf32, #tpu.memory_space<vmem>>, vector<128x128xf32>
    tpu.vector_store %arg7[%c0_7, %c0_8], %9 {strides = array<i32>} : memref<128x128xf32, #tpu.memory_space<vmem>>, vector<128x128xf32>,
    %c0_9 = arith.constant 0 : index
    %c0_10 = arith.constant 0 : index
    %11 = vector.load %arg10[%c0_9, %c0_10] : memref<8x128xf32, #tpu.memory_space<vmem>>, vector<8x128xf32>
    %12 = arith.truncf %11 : vector<8x128xf32> to vector<8x128xbf16>
    %13 = arith.truncf %9 : vector<128x128xf32> to vector<128x128xbf16>
    %cst_11 = arith.constant dense<0.000000e+00> : vector<8x128xf32>
    %14 = tpu.matmul %12, %13, %cst_11 {dimension_numbers = #tpu.dot_dimension_numbers<[1], [1], [0], [0], [0, 0, 1, 0], [], []>} : vector<8x128xbf16>, vector<128x128xbf16>, vector<8x128xf32> -> vector<8x128xf32>
    %c0_12 = arith.constant 0 : index
    %c0_13 = arith.constant 0 : index
    %15 = vector.load %arg8[%c0_12, %c0_13] : memref<8x128xf32, #tpu.memory_space<vmem>>, vector<8x128xf32>
    tpu.vector_store %arg8[%c0_12, %c0_13], %14 {strides = array<i32>} : memref<8x128xf32, #tpu.memory_space<vmem>>, vector<8x128xf32>,
    %c0_14 = arith.constant 0 : index
    %c0_15 = arith.constant 0 : index
    %16 = vector.load %arg11[%c0_14, %c0_15] : memref<8x1xf32, #tpu.memory_space<vmem>>, vector<8x1xf32>
    %cst_16 = arith.constant dense<0xFF800000> : vector<8xf32>
    %17 = vector.multi_reduction <maximumf>, %14, %cst_16 [1] : vector<8x128xf32> to vector<8xf32>
    %18 = vector.shape_cast %17 : vector<8xf32> to vector<8x1xf32>
    %19 = arith.maximumf %16, %18 : vector<8x1xf32>
    %20 = arith.subf %16, %19 : vector<8x1xf32>
    %21 = math.exp %20 : vector<8x1xf32>
    %c0_17 = arith.constant 0 : index
    %c0_18 = arith.constant 0 : index
    %22 = vector.load %arg12[%c0_17, %c0_18] : memref<8x1xf32, #tpu.memory_space<vmem>>, vector<8x1xf32>
    %23 = arith.mulf %21, %22 : vector<8x1xf32>
    %24 = vector.broadcast %19 : vector<8x1xf32> to vector<8x128xf32>
    %25 = arith.subf %14, %24 : vector<8x128xf32>
    %26 = math.exp %25 : vector<8x128xf32>
    %cst_19 = arith.constant dense<0.000000e+00> : vector<8xf32>
    %27 = vector.multi_reduction <add>, %26, %cst_19 [1] : vector<8x128xf32> to vector<8xf32>
    %28 = vector.shape_cast %27 : vector<8xf32> to vector<8x1xf32>
    %29 = arith.addf %23, %28 : vector<8x1xf32>
    %c0_20 = arith.constant 0 : index
    %c0_21 = arith.constant 0 : index
    %30 = vector.load %arg12[%c0_20, %c0_21] : memref<8x1xf32, #tpu.memory_space<vmem>>, vector<8x1xf32>
    tpu.vector_store %arg12[%c0_20, %c0_21], %29 {strides = array<i32>} : memref<8x1xf32, #tpu.memory_space<vmem>>, vector<8x1xf32>,
    %c0_22 = arith.constant 0 : index
    %c0_23 = arith.constant 0 : index
    %31 = vector.load %arg11[%c0_22, %c0_23] : memref<8x1xf32, #tpu.memory_space<vmem>>, vector<8x1xf32>
    tpu.vector_store %arg11[%c0_22, %c0_23], %19 {strides = array<i32>} : memref<8x1xf32, #tpu.memory_space<vmem>>, vector<8x1xf32>,
    %32 = tpu.iota {dimensions = array<i32: 0>} : vector<8x128xi32>
    %33 = tpu.iota {dimensions = array<i32: 1>} : vector<8x128xi32>
    %c128_i32 = arith.constant 128 : i32
    %34 = arith.muli %arg0, %c128_i32 : i32
    %35 = vector.broadcast %34 : i32 to vector<8x128xi32>
    %36 = arith.addi %33, %35 : vector<8x128xi32>
    %c0_24 = arith.constant 0 : index
    %c0_25 = arith.constant 0 : index
    %37 = vector.load %arg13[%c0_24, %c0_25] : memref<8x1xf32, #tpu.memory_space<vmem>>, vector<8x1xf32>
    %c32_i32 = arith.constant 32 : i32
    %38 = vector.broadcast %c32_i32 : i32 to vector<8x128xi32>
    %39 = arith.muli %32, %38 : vector<8x128xi32>
    %40 = arith.cmpi eq, %36, %39 : vector<8x128xi32>
    %cst_26 = arith.constant 0.000000e+00 : f32
    %41 = vector.broadcast %cst_26 : f32 to vector<8x128xf32>
    %42 = arith.select %40, %14, %41 : vector<8x128xi1>, vector<8x128xf32>
    %cst_27 = arith.constant dense<0.000000e+00> : vector<8xf32>
    %43 = vector.multi_reduction <add>, %42, %cst_27 [1] : vector<8x128xf32> to vector<8xf32>
    %44 = vector.shape_cast %43 : vector<8xf32> to vector<8x1xf32>
    %45 = arith.addf %37, %44 : vector<8x1xf32>
    %c0_28 = arith.constant 0 : index
    %c0_29 = arith.constant 0 : index
    %46 = vector.load %arg13[%c0_28, %c0_29] : memref<8x1xf32, #tpu.memory_space<vmem>>, vector<8x1xf32>
    tpu.vector_store %arg13[%c0_28, %c0_29], %45 {strides = array<i32>} : memref<8x1xf32, #tpu.memory_space<vmem>>, vector<8x1xf32>,
    %c1_i32 = arith.constant 1 : i32
    %47 = arith.cmpi eq, %arg0, %c1_i32 : i32
    %48 = arith.extui %47 : i1 to i32
    %c0_i32_30 = arith.constant 0 : i32
    %49 = arith.cmpi ne, %48, %c0_i32_30 : i32
    scf.if %49 {
      %c0_31 = arith.constant 0 : index
      %c0_32 = arith.constant 0 : index
      %50 = vector.load %arg11[%c0_31, %c0_32] : memref<8x1xf32, #tpu.memory_space<vmem>>, vector<8x1xf32>
      %c0_33 = arith.constant 0 : index
      %c0_34 = arith.constant 0 : index
      %51 = vector.load %arg12[%c0_33, %c0_34] : memref<8x1xf32, #tpu.memory_space<vmem>>, vector<8x1xf32>
      %52 = math.log %51 : vector<8x1xf32>
      %53 = arith.addf %50, %52 : vector<8x1xf32>
      %c0_35 = arith.constant 0 : index
      %c0_36 = arith.constant 0 : index
      %54 = vector.load %arg13[%c0_35, %c0_36] : memref<8x1xf32, #tpu.memory_space<vmem>>, vector<8x1xf32>
      %55 = arith.subf %53, %54 : vector<8x1xf32>
      %56 = vector.shape_cast %55 : vector<8x1xf32> to vector<1x8x1xf32>
      %cst_37 = arith.constant dense<0.000000e+00> : vector<1xf32>
      %57 = vector.multi_reduction <add>, %56, %cst_37 [1, 2] : vector<1x8x1xf32> to vector<1xf32>
      %58 = vector.shape_cast %57 : vector<1xf32> to vector<1x1x1xf32>
      %59 = vector.extract %58[0, 0, 0] : f32 from vector<1x1x1xf32>
      %cst_38 = arith.constant 1.250000e-01 : f32
      %60 = arith.mulf %59, %cst_38 : f32
      %c0_39 = arith.constant 0 : index
      %c0_40 = arith.constant 0 : index
      %61 = memref.load %arg9[%c0_39, %c0_40] : memref<1x1xf32, #tpu.memory_space<smem>>
      memref.store %60, %arg9[%c0_39, %c0_40] : memref<1x1xf32, #tpu.memory_space<smem>>
    } else {
    }
    return
  }
  func.func @transform_0(%arg0: i32) -> (i32, i32, i32) {
    %c0_i32 = arith.constant 0 : i32
    %c0_i32_0 = arith.constant 0 : i32
    %c0_i32_1 = arith.constant 0 : i32
    %c0_i32_2 = arith.constant 0 : i32
    return %c0_i32, %c0_i32_0, %c0_i32_1 : i32, i32, i32
  }
  func.func @transform_1(%arg0: i32) -> (i32, i32, i32) {
    %c0_i32 = arith.constant 0 : i32
    %c0_i32_0 = arith.constant 0 : i32
    %c0_i32_1 = arith.constant 0 : i32
    %c0_i32_2 = arith.constant 0 : i32
    return %c0_i32, %c0_i32_0, %c0_i32_1 : i32, i32, i32
  }
  func.func @transform_2(%arg0: i32) -> (i32, i32, i32) {
    %c0_i32 = arith.constant 0 : i32
    %c0_i32_0 = arith.constant 0 : i32
    %c0_i32_1 = arith.constant 0 : i32
    return %arg0, %c0_i32, %c0_i32_0 : i32, i32, i32
  }
  func.func @transform_3(%arg0: i32) -> (i32, i32) {
    %c0_i32 = arith.constant 0 : i32
    %c0_i32_0 = arith.constant 0 : i32
    %c0_i32_1 = arith.constant 0 : i32
    return %c0_i32, %c0_i32_0 : i32, i32
  }
  func.func @transform_4(%arg0: i32) -> (i32, i32) {
    %c0_i32 = arith.constant 0 : i32
    %c0_i32_0 = arith.constant 0 : i32
    %c0_i32_1 = arith.constant 0 : i32
    return %c0_i32, %c0_i32_0 : i32, i32
  }
  func.func @transform_5(%arg0: i32) -> (i32, i32) {
    %c0_i32 = arith.constant 0 : i32
    %c0_i32_0 = arith.constant 0 : i32
    %c0_i32_1 = arith.constant 0 : i32
    return %c0_i32, %c0_i32_0 : i32, i32
  }
  func.func @transform_6(%arg0: i32) -> (i32, i32) {
    %c0_i32 = arith.constant 0 : i32
    %c0_i32_0 = arith.constant 0 : i32
    return %arg0, %c0_i32 : i32, i32
  }
  func.func @transform_7(%arg0: i32) -> (i32, i32) {
    %c0_i32 = arith.constant 0 : i32
    %c0_i32_0 = arith.constant 0 : i32
    return %c0_i32, %arg0 : i32, i32
  }
  func.func @transform_8(%arg0: i32) -> (i32, i32) {
    %c0_i32 = arith.constant 0 : i32
    %c0_i32_0 = arith.constant 0 : i32
    %c0_i32_1 = arith.constant 0 : i32
    return %c0_i32, %c0_i32_0 : i32, i32
  }
}

</mosaic_0001>

<llo_original>
// kernel: tpu_custom_call.1
$region0: #{tpu_custom_call.1}
  #allocation0 [shape = 'u32[]', space=smem, size = 0x4, offset = 0x4, fixed_abs, tag = 'smem constant byte address 0x4 - core index']
  #allocation1 [shape = 'u32[144,128]{1,0:T(1,128)}', space=vmem, size = 0x12000, scoped, tag = 'internal scratch']
  #allocation2 [shape = 'f32[8,128]{1,0:T(8,128)}', space=vmem, size = 0x1000, scoped, tag = 'scratch operand']
  #allocation3 [shape = 'f32[8,1]{1,0:T(8,128)}', space=vmem, size = 0x1000, scoped, tag = 'scratch operand']
  #allocation4 [shape = 'f32[8,1]{1,0:T(8,128)}', space=vmem, size = 0x1000, scoped, tag = 'scratch operand']
  #allocation5 [shape = 'f32[8,1]{1,0:T(8,128)}', space=vmem, size = 0x1000, scoped, tag = 'scratch operand']
  #allocation21 [shape = 's32[]', space=sflag, size = 0x4, offset = 0, fixed_abs, tag = 'sflag constant byte address 0x0 - dummy sync flag']
  #allocation23 [shape = 's32[]', space=sflag, size = 0x4, offset = 0, fixed_abs, tag = 'sflag constant byte address 0x0 - dummy sync flag']
  #allocation25 [shape = 's32[]', space=sflag, size = 0x4, offset = 0, fixed_abs, tag = 'sflag constant byte address 0x0 - dummy sync flag']
  %s0 = inlined_call_operand.hbm [shape: bf16[8,32,128], index: 0, kind: input, shape index: {}]
  %s1 = inlined_call_operand.hbm [shape: bf16[8,32,128], index: 1, kind: input, shape index: {}]
  %s2 = inlined_call_operand.hbm [shape: bf16[256,32,128], index: 2, kind: input, shape index: {}]
  %s3 = inlined_call_operand.hbm [shape: bf16[128,128], index: 3, kind: input, shape index: {}]
  %s4 = inlined_call_operand.hbm [shape: f32[1,128], index: 4, kind: input, shape index: {}]
  %s5 = inlined_call_operand.hbm [shape: f32[8,128], index: 5, kind: output, shape index: {0}]
  %s6 = inlined_call_operand.hbm [shape: f32[256,128], index: 6, kind: output, shape index: {1}]
  %s7 = inlined_call_operand.hbm [shape: f32[8,256], index: 7, kind: output, shape index: {2}]
  %s8 = inlined_call_operand.hbm [shape: f32[1,1], index: 8, kind: output, shape index: {3}]
  %9 = xla_tuple %s5, %s6, %s7, %s8
  %s10 = sld [smem:[#allocation0]]
  $region105: #{tpu_custom_call.1} parent=0
    _
  %s12 = ssub.s32 1, %s10
  %s13 = scalar_select 0, %s12, %s10
  $region1: #{tpu_custom_call.1} parent=0
    #allocation6 [shape = 'u8[32768]{0}', space=vmem, size = 0x8000, scoped, tag = 'input window, operand 0, single buffered']
    #allocation7 [shape = 's32[2]{0}', space=sflag, size = 0x8, scoped, tag = 'scoped memory for tpu_custom_call.1']
    #allocation8 [shape = 's32[2]{0}', space=sflag, size = 0x8, scoped, tag = 'scoped memory for tpu_custom_call.1']
    #allocation9 [shape = 's32[2]{0}', space=sflag, size = 0x8, scoped, tag = 'scoped memory for tpu_custom_call.1']
    #allocation10 [shape = 'u8[32768]{0}', space=vmem, size = 0x8000, scoped, tag = 'input window, operand 1, single buffered']
    #allocation11 [shape = 's32[1]{0}', space=sflag, size = 0x4, scoped, tag = 'scoped memory for tpu_custom_call.1']
    #allocation12 [shape = 'u8[1048576]{0}', space=vmem, size = 0x100000, scoped, tag = 'input window, operand 2']
    #allocation13 [shape = 'u8[32768]{0}', space=vmem, size = 0x8000, scoped, tag = 'input window, operand 3, single buffered']
    #allocation14 [shape = 'u8[512]{0}', space=vmem, size = 0x400, scoped, tag = 'input window, operand 4, single buffered']
    #allocation15 [shape = 's32[1]{0}', space=sflag, size = 0x4, scoped, tag = 'scoped memory for tpu_custom_call.1']
    #allocation16 [shape = 'u8[4096]{0}', space=vmem, size = 0x1000, scoped, tag = 'output window, operand 0, single buffered']
    #allocation17 [shape = 'u8[131072]{0}', space=vmem, size = 0x20000, scoped, tag = 'output window, operand 1']
    #allocation18 [shape = 's32[2]{0}', space=sflag, size = 0x8, scoped, tag = 'scoped memory for tpu_custom_call.1']
    #allocation19 [shape = 'u8[8192]{0}', space=vmem, size = 0x2000, scoped, tag = 'output window, operand 2']
    #allocation20 [shape = 'u8[512]{0}', space=smem, size = 0x200, scoped, tag = 'output window, operand 3, single buffered']
    %14 = vsyncpa [#allocation7], 0
    %15 = vsyncpa [#allocation11], 0
    %16 = vsyncpa [#allocation15], 0
    %17 = vsyncpa [#allocation8], 0
    %18 = vsyncpa [#allocation18], 0
    %s19 = scalar_lea.sflag [#allocation18], 1
    %20 = vsyncpa %s19, 0
    %21 = vsyncpa [#allocation9], 0
    loop: start=0, step=1, limit=4
    $region2: #{tpu_custom_call.1} parent=1 // loop_pre_header
      _
    $region3: #{tpu_custom_call.1} parent=1 // loop_header
      %s23 = sphi 0, %s27
      %p24 = scmp.ge.s32.totalorder %s23, 4
      %s31 = sphi 0, %s31
      %s33 = sphi 0, %s31
      %s34 = sphi 0, %s33
      %s48 = sphi 0, %s34
      %s52 = sphi 0, %s52
      %s54 = sphi 0, %s52
      %s55 = sphi 0, %s54
      %s69 = sphi 0, %s55
      %s75 = sphi 0, %s77
      %s78 = sphi 0, %s75
      %s79 = sphi 0, %s78
      %s95 = sphi 0, %s79
      %s99 = sphi 0, %s99
      %s101 = sphi 0, %s99
      %s102 = sphi 0, %s101
      %s116 = sphi 0, %s102
      %s120 = sphi 0, %s120
      %s122 = sphi 0, %s120
      %s123 = sphi 0, %s122
      %s137 = sphi 0, %s123
      %s141 = sphi 0, %s141
      %s143 = sphi 0, %s141
      %s144 = sphi 0, %s143
      %s158 = sphi 0, %s144
      %s164 = sphi 0, %s166
      %s167 = sphi 0, %s164
      %s168 = sphi 0, %s167
      %s184 = sphi 0, %s168
      %s190 = sphi 0, %s192
      %s193 = sphi 0, %s190
      %s194 = sphi 0, %s193
      %s210 = sphi 0, %s194
      %s214 = sphi 0, %s214
      %s216 = sphi 0, %s214
      %s217 = sphi 0, %s216
      %s231 = sphi 0, %s217
    $region4: #{tpu_custom_call.1} parent=1 // loop_header_branch
      %26 = sbr.rel (%p24) target = $region8
    $region5: #{tpu_custom_call.1} parent=1 // loop_body
      %s28 = ssub.s32 %s23, 1
      %s29 = ssub.s32 %s23, 2
      %s30 = sadd.s32 %s23, 1
      %s32 = sadd.s32 %s31, 1
      %p35 = scmp.eq.s32.totalorder %s23, 1
      %p36 = scmp.ne.s32.totalorder %s31, %s33
      %p37 = scmp.eq.s32.totalorder %s23, 0
      %p38 = por %p36, %p37
      %p39 = scmp.ne.s32.totalorder %s31, %s33
      %p40 = scmp.eq.s32.totalorder %s28, 1
      %p41 = por %p39, %p40
      %p42 = scmp.ne.s32.totalorder %s33, %s34
      %p43 = scmp.eq.s32.totalorder %s28, 0
      %p44 = por %p42, %p43
      %p45 = scmp.ne.s32.totalorder %s33, %s34
      %p46 = scmp.eq.s32.totalorder %s29, 1
      %p47 = por %p45, %p46
      %p49 = scmp.ne.s32.totalorder %s34, %s48
      %p50 = scmp.eq.s32.totalorder %s29, 0
      %p51 = por %p49, %p50
      %s53 = sadd.s32 %s52, 1
      %p56 = scmp.eq.s32.totalorder %s23, 1
      %p57 = scmp.ne.s32.totalorder %s52, %s54
      %p58 = scmp.eq.s32.totalorder %s23, 0
      %p59 = por %p57, %p58
      %p60 = scmp.ne.s32.totalorder %s52, %s54
      %p61 = scmp.eq.s32.totalorder %s28, 1
      %p62 = por %p60, %p61
      %p63 = scmp.ne.s32.totalorder %s54, %s55
      %p64 = scmp.eq.s32.totalorder %s28, 0
      %p65 = por %p63, %p64
      %p66 = scmp.ne.s32.totalorder %s54, %s55
      %p67 = scmp.eq.s32.totalorder %s29, 1
      %p68 = por %p66, %p67
      %p70 = scmp.ne.s32.totalorder %s55, %s69
      %p71 = scmp.eq.s32.totalorder %s29, 0
      %p72 = por %p70, %p71
      %s73 = ssub.s32 %s23, %s30
      %p74 = scmp.eq.s32.totalorder %s73, 0
      %s76 = sadd.s32 %s75, 1
      %s77 = scalar_select %p74, %s75, %s76
      %p80 = pneg %p74
      %p81 = scmp.eq.s32.totalorder %s23, 1
      %p82 = por %p80, %p81
      %p83 = scmp.ne.s32.totalorder %s75, %s78
      %p84 = scmp.eq.s32.totalorder %s23, 0
      %p85 = por %p83, %p84
      %p86 = scmp.ne.s32.totalorder %s75, %s78
      %p87 = scmp.eq.s32.totalorder %s28, 1
      %p88 = por %p86, %p87
      %p89 = scmp.ne.s32.totalorder %s78, %s79
      %p90 = scmp.eq.s32.totalorder %s28, 0
      %p91 = por %p89, %p90
      %p92 = scmp.ne.s32.totalorder %s78, %s79
      %p93 = scmp.eq.s32.totalorder %s29, 1
      %p94 = por %p92, %p93
      %p96 = scmp.ne.s32.totalorder %s79, %s95
      %p97 = scmp.eq.s32.totalorder %s29, 0
      %p98 = por %p96, %p97
      %s100 = sadd.s32 %s99, 1
      %p103 = scmp.eq.s32.totalorder %s23, 1
      %p104 = scmp.ne.s32.totalorder %s99, %s101
      %p105 = scmp.eq.s32.totalorder %s23, 0
      %p106 = por %p104, %p105
      %p107 = scmp.ne.s32.totalorder %s99, %s101
      %p108 = scmp.eq.s32.totalorder %s28, 1
      %p109 = por %p107, %p108
      %p110 = scmp.ne.s32.totalorder %s101, %s102
      %p111 = scmp.eq.s32.totalorder %s28, 0
      %p112 = por %p110, %p111
      %p113 = scmp.ne.s32.totalorder %s101, %s102
      %p114 = scmp.eq.s32.totalorder %s29, 1
      %p115 = por %p113, %p114
      %p117 = scmp.ne.s32.totalorder %s102, %s116
      %p118 = scmp.eq.s32.totalorder %s29, 0
      %p119 = por %p117, %p118
      %s121 = sadd.s32 %s120, 1
      %p124 = scmp.eq.s32.totalorder %s23, 1
      %p125 = scmp.ne.s32.totalorder %s120, %s122
      %p126 = scmp.eq.s32.totalorder %s23, 0
      %p127 = por %p125, %p126
      %p128 = scmp.ne.s32.totalorder %s120, %s122
      %p129 = scmp.eq.s32.totalorder %s28, 1
      %p130 = por %p128, %p129
      %p131 = scmp.ne.s32.totalorder %s122, %s123
      %p132 = scmp.eq.s32.totalorder %s28, 0
      %p133 = por %p131, %p132
      %p134 = scmp.ne.s32.totalorder %s122, %s123
      %p135 = scmp.eq.s32.totalorder %s29, 1
      %p136 = por %p134, %p135
      %p138 = scmp.ne.s32.totalorder %s123, %s137
      %p139 = scmp.eq.s32.totalorder %s29, 0
      %p140 = por %p138, %p139
      %s142 = sadd.s32 %s141, 1
      %p145 = scmp.eq.s32.totalorder %s23, 1
      %p146 = scmp.ne.s32.totalorder %s141, %s143
      %p147 = scmp.eq.s32.totalorder %s23, 0
      %p148 = por %p146, %p147
      %p149 = scmp.ne.s32.totalorder %s141, %s143
      %p150 = scmp.eq.s32.totalorder %s28, 1
      %p151 = por %p149, %p150
      %p152 = scmp.ne.s32.totalorder %s143, %s144
      %p153 = scmp.eq.s32.totalorder %s28, 0
      %p154 = por %p152, %p153
      %p155 = scmp.ne.s32.totalorder %s143, %s144
      %p156 = scmp.eq.s32.totalorder %s29, 1
      %p157 = por %p155, %p156
      %p159 = scmp.ne.s32.totalorder %s144, %s158
      %p160 = scmp.eq.s32.totalorder %s29, 0
      %p161 = por %p159, %p160
      %s162 = ssub.s32 %s23, %s30
      %p163 = scmp.eq.s32.totalorder %s162, 0
      %s165 = sadd.s32 %s164, 1
      %s166 = scalar_select %p163, %s164, %s165
      %p169 = pneg %p163
      %p170 = scmp.eq.s32.totalorder %s23, 1
      %p171 = por %p169, %p170
      %p172 = scmp.ne.s32.totalorder %s164, %s167
      %p173 = scmp.eq.s32.totalorder %s23, 0
      %p174 = por %p172, %p173
      %p175 = scmp.ne.s32.totalorder %s164, %s167
      %p176 = scmp.eq.s32.totalorder %s28, 1
      %p177 = por %p175, %p176
      %p178 = scmp.ne.s32.totalorder %s167, %s168
      %p179 = scmp.eq.s32.totalorder %s28, 0
      %p180 = por %p178, %p179
      %p181 = scmp.ne.s32.totalorder %s167, %s168
      %p182 = scmp.eq.s32.totalorder %s29, 1
      %p183 = por %p181, %p182
      %p185 = scmp.ne.s32.totalorder %s168, %s184
      %p186 = scmp.eq.s32.totalorder %s29, 0
      %p187 = por %p185, %p186
      %s188 = ssub.s32 %s23, %s30
      %p189 = scmp.eq.s32.totalorder %s188, 0
      %s191 = sadd.s32 %s190, 1
      %s192 = scalar_select %p189, %s190, %s191
      %p195 = pneg %p189
      %p196 = scmp.eq.s32.totalorder %s23, 1
      %p197 = por %p195, %p196
      %p198 = scmp.ne.s32.totalorder %s190, %s193
      %p199 = scmp.eq.s32.totalorder %s23, 0
      %p200 = por %p198, %p199
      %p201 = scmp.ne.s32.totalorder %s190, %s193
      %p202 = scmp.eq.s32.totalorder %s28, 1
      %p203 = por %p201, %p202
      %p204 = scmp.ne.s32.totalorder %s193, %s194
      %p205 = scmp.eq.s32.totalorder %s28, 0
      %p206 = por %p204, %p205
      %p207 = scmp.ne.s32.totalorder %s193, %s194
      %p208 = scmp.eq.s32.totalorder %s29, 1
      %p209 = por %p207, %p208
      %p211 = scmp.ne.s32.totalorder %s194, %s210
      %p212 = scmp.eq.s32.totalorder %s29, 0
      %p213 = por %p211, %p212
      %s215 = sadd.s32 %s214, 1
      %p218 = scmp.eq.s32.totalorder %s23, 1
      %p219 = scmp.ne.s32.totalorder %s214, %s216
      %p220 = scmp.eq.s32.totalorder %s23, 0
      %p221 = por %p219, %p220
      %p222 = scmp.ne.s32.totalorder %s214, %s216
      %p223 = scmp.eq.s32.totalorder %s28, 1
      %p224 = por %p222, %p223
      %p225 = scmp.ne.s32.totalorder %s216, %s217
      %p226 = scmp.eq.s32.totalorder %s28, 0
      %p227 = por %p225, %p226
      %p228 = scmp.ne.s32.totalorder %s216, %s217
      %p229 = scmp.eq.s32.totalorder %s29, 1
      %p230 = por %p228, %p229
      %p232 = scmp.ne.s32.totalorder %s217, %s231
      %p233 = scmp.eq.s32.totalorder %s29, 0
      %p234 = por %p232, %p233
      %p235 = scmp.le.s32.totalorder 1, %s23
      %p236 = scmp.lt.s32.totalorder %s23, 3
      %p237 = pnand %p235, %p236
      %p238 = pneg %p237
      // Predicated region
      $region9: #{tpu_custom_call.1} parent=5 // pred_check
        _
      $region10: #{tpu_custom_call.1} parent=5 // pred_check_branch
        %240 = sbr.rel (%p237) target = $region12
      $region11: #{tpu_custom_call.1} parent=5 // pred_region
        %s241 = ssub.s32 %s23, 1
        // Predicated region
        $region13: #{tpu_custom_call.1} parent=11 // pred_check
          %p242 = pneg %p44
        $region14: #{tpu_custom_call.1} parent=11 // pred_check_branch
          %244 = sbr.rel (%p242) target = $region16
        $region15: #{tpu_custom_call.1} parent=11 // pred_region
          #allocation22 [shape = 'u32[6]{0}', space=smem, size = 0x18, scoped, tag = 'DMA stride descriptor']
          %s246 = ssub.s32 1024, 1024
          %247 = vsyncadd [#allocation7], %s246
          %s249 = sshll.u32 1, 14
          %s250 = sxor.u32 4294967295, %s249
          %s252 = sld [smem:[#allocation0]]
          %s253 = sadd.s32 2, %s252
          %s255 = sshll.u32 7, 26
          %s256 = sxor.u32 4294967295, %s255
          %s257 = sand.u32 0, %s256
          %s258 = sshll.u32 %s253, 26
          %s259 = sor.u32 %s257, %s258
          %s260 = sshll.u32 [#allocation6], 4
          %s261 = int_to_ptr.vmem [resolvable:$true] %s260
          %267 = sst [smem:[#allocation22]] 256
          %s268 = scalar_lea.smem [#allocation22], 1
          %269 = sst [smem:[%s268]] 128
          %s270 = scalar_lea.smem [#allocation22], 2
          %271 = sst [smem:[%s270]] 2
          %s272 = scalar_lea.smem [#allocation22], 3
          %273 = sst [smem:[%s272]] 64
          %s274 = scalar_lea.smem [#allocation22], 4
          %275 = sst [smem:[%s274]] 64
          %s276 = scalar_lea.smem [#allocation22], 5
          %277 = sst [smem:[%s276]] 4
          %279 = dma.general %s0, 1024, %s261, [#allocation7], [#allocation21], [#allocation22], %s259, 0
        $region16: #{tpu_custom_call.1} parent=11 // pred_fallthru
          _
        // Predicated region
        $region17: #{tpu_custom_call.1} parent=11 // pred_check
          %p280 = pneg %p65
        $region18: #{tpu_custom_call.1} parent=11 // pred_check_branch
          %282 = sbr.rel (%p280) target = $region20
        $region19: #{tpu_custom_call.1} parent=11 // pred_region
          #allocation24 [shape = 'u32[6]{0}', space=smem, size = 0x18, scoped, tag = 'DMA stride descriptor']
          %s284 = ssub.s32 1024, 1024
          %285 = vsyncadd [#allocation11], %s284
          %s287 = sshll.u32 1, 14
          %s288 = sxor.u32 4294967295, %s287
          %s290 = sld [smem:[#allocation0]]
          %s291 = sadd.s32 2, %s290
          %s293 = sshll.u32 7, 26
          %s294 = sxor.u32 4294967295, %s293
          %s295 = sand.u32 0, %s294
          %s296 = sshll.u32 %s291, 26
          %s297 = sor.u32 %s295, %s296
          %s298 = sshll.u32 [#allocation10], 4
          %s299 = int_to_ptr.vmem [resolvable:$true] %s298
          %305 = sst [smem:[#allocation24]] 256
          %s306 = scalar_lea.smem [#allocation24], 1
          %307 = sst [smem:[%s306]] 128
          %s308 = scalar_lea.smem [#allocation24], 2
          %309 = sst [smem:[%s308]] 2
          %s310 = scalar_lea.smem [#allocation24], 3
          %311 = sst [smem:[%s310]] 64
          %s312 = scalar_lea.smem [#allocation24], 4
          %313 = sst [smem:[%s312]] 64
          %s314 = scalar_lea.smem [#allocation24], 5
          %315 = sst [smem:[%s314]] 4
          %317 = dma.general %s1, 1024, %s299, [#allocation11], [#allocation23], [#allocation24], %s297, 0
        $region20: #{tpu_custom_call.1} parent=11 // pred_fallthru
          _
        // Predicated region
        $region21: #{tpu_custom_call.1} parent=11 // pred_check
          %p318 = pneg %p112
        $region22: #{tpu_custom_call.1} parent=11 // pred_check_branch
          %320 = sbr.rel (%p318) target = $region24
        $region23: #{tpu_custom_call.1} parent=11 // pred_region
          %s322 = ssub.s32 1024, 1024
          %323 = vsyncadd [#allocation11], %s322
          %s324 = sshll.u32 [#allocation13], 4
          %s325 = int_to_ptr.vmem [resolvable:$true] %s324
          %330 = dma.hbm_to_vmem [thread:$0]  %s3, 1024, %s325, [#allocation11], 64, 64, 4
        $region24: #{tpu_custom_call.1} parent=11 // pred_fallthru
          _
        // Predicated region
        $region25: #{tpu_custom_call.1} parent=11 // pred_check
          %p331 = pneg %p133
        $region26: #{tpu_custom_call.1} parent=11 // pred_check_branch
          %333 = sbr.rel (%p331) target = $region28
        $region27: #{tpu_custom_call.1} parent=11 // pred_region
          %s335 = ssub.s32 16, 16
          %336 = vsyncadd [#allocation15], %s335
          %s338 = sshll.u32 [#allocation14], 4
          %s339 = int_to_ptr.vmem [resolvable:$true] %s338
          %341 = dma.hbm_to_vmem [thread:$0]  %s4, 16, %s339, [#allocation15]
        $region28: #{tpu_custom_call.1} parent=11 // pred_fallthru
          _
      $region12: #{tpu_custom_call.1} parent=5 // pred_fallthru
        _
      %p342 = scmp.lt.s32.totalorder %s23, 2
      // Predicated region
      $region29: #{tpu_custom_call.1} parent=5 // pred_check
        %p343 = pneg %p342
      $region30: #{tpu_custom_call.1} parent=5 // pred_check_branch
        %345 = sbr.rel (%p343) target = $region32
      $region31: #{tpu_custom_call.1} parent=5 // pred_region
        // Predicated region
        $region33: #{tpu_custom_call.1} parent=31 // pred_check
          %p346 = pneg %p85
        $region34: #{tpu_custom_call.1} parent=31 // pred_check_branch
          %348 = sbr.rel (%p346) target = $region36
        $region35: #{tpu_custom_call.1} parent=31 // pred_region
          #allocation26 [shape = 'u32[6]{0}', space=smem, size = 0x18, scoped, tag = 'DMA stride descriptor']
          %s349 = sand.u32 %s23, 1
          %s350 = scalar_lea.sflag [#allocation7], %s349
          %s351 = sand.u32 %s75, 1
          %s352 = smul.addr %s351, 1024
          %s353 = scalar_lea.vmem [#allocation12], %s352
          %s354 = smul.u32 128, %s23
          %s356 = ssub.s32 16384, 16384
          %357 = vsyncadd %s350, %s356
          %s358 = smul.addr %s354, 4
          %s359 = smul.addr %s358, 64
          %s360 = scalar_lea.hbm %s2, %s359
          %s362 = sshll.u32 1, 14
          %s363 = sxor.u32 4294967295, %s362
          %s365 = sld [smem:[#allocation0]]
          %s366 = sadd.s32 2, %s365
          %s368 = sshll.u32 7, 26
          %s369 = sxor.u32 4294967295, %s368
          %s370 = sand.u32 0, %s369
          %s371 = sshll.u32 %s366, 26
          %s372 = sor.u32 %s370, %s371
          %s373 = sshll.u32 %s353, 4
          %s374 = int_to_ptr.vmem [resolvable:$true] %s373
          %380 = sst [smem:[#allocation26]] 256
          %s381 = scalar_lea.smem [#allocation26], 1
          %382 = sst [smem:[%s381]] 128
          %s383 = scalar_lea.smem [#allocation26], 2
          %384 = sst [smem:[%s383]] 2
          %s385 = scalar_lea.smem [#allocation26], 3
          %386 = sst [smem:[%s385]] 64
          %s387 = scalar_lea.smem [#allocation26], 4
          %388 = sst [smem:[%s387]] 64
          %s389 = scalar_lea.smem [#allocation26], 5
          %390 = sst [smem:[%s389]] 4
          %392 = dma.general %s360, 16384, %s374, %s350, [#allocation25], [#allocation26], %s372, 0
        $region36: #{tpu_custom_call.1} parent=31 // pred_fallthru
          _
      $region32: #{tpu_custom_call.1} parent=5 // pred_fallthru
        _
      %p393 = scmp.le.s32.totalorder 1, %s23
      %p394 = scmp.lt.s32.totalorder %s23, 3
      %p395 = pnand %p393, %p394
      %p396 = pneg %p395
      // Predicated region
      $region37: #{tpu_custom_call.1} parent=5 // pred_check
        _
      $region38: #{tpu_custom_call.1} parent=5 // pred_check_branch
        %398 = sbr.rel (%p395) target = $region40
      $region39: #{tpu_custom_call.1} parent=5 // pred_region
        %s399 = ssub.s32 %s23, 1
        // Predicated region
        $region41: #{tpu_custom_call.1} parent=39 // pred_check
          %p400 = pneg %p44
        $region42: #{tpu_custom_call.1} parent=39 // pred_check_branch
          %402 = sbr.rel (%p400) target = $region44
        $region43: #{tpu_custom_call.1} parent=39 // pred_region
          %403 = dma.done [#allocation7], 1024
        $region44: #{tpu_custom_call.1} parent=39 // pred_fallthru
          _
        // Predicated region
        $region45: #{tpu_custom_call.1} parent=39 // pred_check
          %p404 = pneg %p65
        $region46: #{tpu_custom_call.1} parent=39 // pred_check_branch
          %406 = sbr.rel (%p404) target = $region48
        $region47: #{tpu_custom_call.1} parent=39 // pred_region
          %407 = dma.done [#allocation11], 1024
        $region48: #{tpu_custom_call.1} parent=39 // pred_fallthru
          _
        %s408 = sand.u32 %s28, 1
        %s409 = scalar_lea.sflag [#allocation7], %s408
        %s410 = sand.u32 %s78, 1
        %s411 = smul.addr %s410, 1024
        %s412 = scalar_lea.vmem [#allocation12], %s411
        // Predicated region
        $region49: #{tpu_custom_call.1} parent=39 // pred_check
          %p413 = pneg %p91
        $region50: #{tpu_custom_call.1} parent=39 // pred_check_branch
          %415 = sbr.rel (%p413) target = $region52
        $region51: #{tpu_custom_call.1} parent=39 // pred_region
          %416 = dma.done %s409, 16384
        $region52: #{tpu_custom_call.1} parent=39 // pred_fallthru
          _
        // Predicated region
        $region53: #{tpu_custom_call.1} parent=39 // pred_check
          %p417 = pneg %p112
        $region54: #{tpu_custom_call.1} parent=39 // pred_check_branch
          %419 = sbr.rel (%p417) target = $region56
        $region55: #{tpu_custom_call.1} parent=39 // pred_region
          %420 = dma.done [#allocation11], 1024
        $region56: #{tpu_custom_call.1} parent=39 // pred_fallthru
          _
        // Predicated region
        $region57: #{tpu_custom_call.1} parent=39 // pred_check
          %p421 = pneg %p133
        $region58: #{tpu_custom_call.1} parent=39 // pred_check_branch
          %423 = sbr.rel (%p421) target = $region60
        $region59: #{tpu_custom_call.1} parent=39 // pred_region
          %424 = dma.done [#allocation15], 16
        $region60: #{tpu_custom_call.1} parent=39 // pred_fallthru
          _
        %p425 = pneg %p44
        %p426 = pneg %p41
        %p427 = pneg %p65
        %p428 = pneg %p62
        %s429 = sand.u32 %s28, 1
        %s430 = scalar_lea.sflag [#allocation7], %s429
        %s431 = sand.u32 %s78, 1
        %s432 = smul.addr %s431, 1024
        %s433 = scalar_lea.vmem [#allocation12], %s432
        %p434 = pneg %p91
        %p435 = pneg %p88
        %p436 = pneg %p112
        %p437 = pneg %p109
        %p438 = pneg %p133
        %p439 = pneg %p130
        %p440 = pneg %p154
        %p441 = pneg %p151
        %p442 = pneg %p180
        %p443 = pneg %p177
        %s444 = sand.u32 %s28, 1
        %s445 = scalar_lea.sflag [#allocation18], %s444
        %s446 = sand.u32 %s167, 1
        %s447 = smul.addr %s446, 128
        %s448 = scalar_lea.vmem [#allocation17], %s447
        %p449 = pneg %p206
        %p450 = pneg %p203
        %s451 = sand.u32 %s28, 1
        %s452 = scalar_lea.sflag [#allocation18], %s451
        %s453 = sand.u32 %s193, 1
        %s454 = smul.addr %s453, 8
        %s455 = scalar_lea.vmem [#allocation19], %s454
        %p456 = pneg %p227
        %p457 = pneg %p224
        %s458 = smul.u32 128, %s28
        %s459 = smul.u32 16, %s28
        %v461 = vld [vmem:[#allocation13] sm:$0xf]
        %v462 = vld [vmem:[#allocation13 + $0x4] sm:$0xf]
        %v463 = vld [vmem:[#allocation13 + $0x8] sm:$0xf]
        %v464 = vld [vmem:[#allocation13 + $0xc] sm:$0xf]
        %v465 = vld [vmem:[#allocation13 + $0x10] sm:$0xf]
        %v466 = vld [vmem:[#allocation13 + $0x14] sm:$0xf]
        %v467 = vld [vmem:[#allocation13 + $0x18] sm:$0xf]
        %v468 = vld [vmem:[#allocation13 + $0x1c] sm:$0xf]
        %v469 = vld [vmem:[#allocation13 + $0x20] sm:$0xf]
        %v470 = vld [vmem:[#allocation13 + $0x24] sm:$0xf]
        %v471 = vld [vmem:[#allocation13 + $0x28] sm:$0xf]
        %v472 = vld [vmem:[#allocation13 + $0x2c] sm:$0xf]
        %v473 = vld [vmem:[#allocation13 + $0x30] sm:$0xf]
        %v474 = vld [vmem:[#allocation13 + $0x34] sm:$0xf]
        %v475 = vld [vmem:[#allocation13 + $0x38] sm:$0xf]
        %v476 = vld [vmem:[#allocation13 + $0x3c] sm:$0xf]
        %v477 = vld [vmem:[#allocation14] sm:$0x1]
        %p478 = scmp.eq.s32.totalorder %s28, 0
        // Predicated region
        $region61: #{tpu_custom_call.1} parent=39 // pred_check
          %p479 = pneg %p478
        $region62: #{tpu_custom_call.1} parent=39 // pred_check_branch
          %481 = sbr.rel (%p479) target = $region64
        $region63: #{tpu_custom_call.1} parent=39 // pred_region
          %v482 = vld [vmem:[#allocation6] sm:$0x1]
          %v483 = vld [vmem:[#allocation6 + $0x8] sm:$0x1]
          %v484 = vld [vmem:[#allocation6 + $0x10] sm:$0x1]
          %v485 = vld [vmem:[#allocation6 + $0x18] sm:$0x1]
          %v486 = vld [vmem:[#allocation6 + $0x20] sm:$0x1]
          %v487 = vld [vmem:[#allocation6 + $0x28] sm:$0x1]
          %v488 = vld [vmem:[#allocation6 + $0x30] sm:$0x1]
          %v489 = vld [vmem:[#allocation6 + $0x38] sm:$0x1]
          %v490 = vunpack.c.l.bf16 %v482
          %v491 = vunpack.c.l.bf16 %v483
          %v492 = vunpack.c.l.bf16 %v484
          %v493 = vunpack.c.l.bf16 %v485
          %v494 = vunpack.c.l.bf16 %v486
          %v495 = vunpack.c.l.bf16 %v487
          %v496 = vunpack.c.l.bf16 %v488
          %v497 = vunpack.c.l.bf16 %v489
          %v498 = vld [vmem:[#allocation10] sm:$0x1]
          %v499 = vld [vmem:[#allocation10 + $0x8] sm:$0x1]
          %v500 = vld [vmem:[#allocation10 + $0x10] sm:$0x1]
          %v501 = vld [vmem:[#allocation10 + $0x18] sm:$0x1]
          %v502 = vld [vmem:[#allocation10 + $0x20] sm:$0x1]
          %v503 = vld [vmem:[#allocation10 + $0x28] sm:$0x1]
          %v504 = vld [vmem:[#allocation10 + $0x30] sm:$0x1]
          %v505 = vld [vmem:[#allocation10 + $0x38] sm:$0x1]
          %v506 = vunpack.c.l.bf16 %v498
          %v507 = vunpack.c.l.bf16 %v499
          %v508 = vunpack.c.l.bf16 %v500
          %v509 = vunpack.c.l.bf16 %v501
          %v510 = vunpack.c.l.bf16 %v502
          %v511 = vunpack.c.l.bf16 %v503
          %v512 = vunpack.c.l.bf16 %v504
          %v513 = vunpack.c.l.bf16 %v505
          %v514 = vadd.f32 %v490, %v506
          %v515 = vadd.f32 %v491, %v507
          %v516 = vadd.f32 %v492, %v508
          %v517 = vadd.f32 %v493, %v509
          %v518 = vadd.f32 %v494, %v510
          %v519 = vadd.f32 %v495, %v511
          %v520 = vadd.f32 %v496, %v512
          %v521 = vadd.f32 %v497, %v513
          %v522 = vmul.f32 %v514, 0.5
          %v523 = vmul.f32 %v515, 0.5
          %v524 = vmul.f32 %v516, 0.5
          %v525 = vmul.f32 %v517, 0.5
          %v526 = vmul.f32 %v518, 0.5
          %v527 = vmul.f32 %v519, 0.5
          %v528 = vmul.f32 %v520, 0.5
          %v529 = vmul.f32 %v521, 0.5
          %v530 = vpack.c.bf16 %v522, %v522
          %v531 = vpack.c.bf16 %v523, %v523
          %v532 = vpack.c.bf16 %v524, %v524
          %v533 = vpack.c.bf16 %v525, %v525
          %v534 = vpack.c.bf16 %v526, %v526
          %v535 = vpack.c.bf16 %v527, %v527
          %v536 = vpack.c.bf16 %v528, %v528
          %v537 = vpack.c.bf16 %v529, %v529
          %v539 = vlaneseq
          %v540 = vshrl.u32 %v539, 7
          %v541 = vsub.s32 0, %v540
          %v542 = vrot.slane %v477, %v541
          %v552 = vunpack.c.l.b16 %v530
          %v553 = vunpack.c.l.b16 %v531
          %v554 = vunpack.c.l.b16 %v532
          %v555 = vunpack.c.l.b16 %v533
          %v556 = vunpack.c.l.b16 %v534
          %v557 = vunpack.c.l.b16 %v535
          %v558 = vunpack.c.l.b16 %v536
          %v559 = vunpack.c.l.b16 %v537
          %v560 = vrot.slane %v553, 7
          %vm561 = vcmask 1041409
          %v562 = vsel %vm561, %v560, %v552
          %v563 = vrot.slane %v554, 6
          %vm564 = vcmask 1042434
          %v565 = vsel %vm564, %v563, %v562
          %v566 = vrot.slane %v555, 5
          %vm567 = vcmask 1043459
          %v568 = vsel %vm567, %v566, %v565
          %v569 = vrot.slane %v556, 4
          %vm570 = vcmask 1044484
          %v571 = vsel %vm570, %v569, %v568
          %v572 = vrot.slane %v557, 3
          %vm573 = vcmask 1045509
          %v574 = vsel %vm573, %v572, %v571
          %v575 = vrot.slane %v558, 2
          %vm576 = vcmask 1046534
          %v577 = vsel %vm576, %v575, %v574
          %v578 = vrot.slane %v559, 1
          %vm579 = vcmask 1047559
          %v580 = vsel %vm579, %v578, %v577
          %v581 = vpack.c.b16 %v580, %v580
          %v599 = vunpack.c.l.b16 %v461
          %v600 = vunpack.c.l.b16 %v462
          %v601 = vunpack.c.l.b16 %v463
          %v602 = vunpack.c.l.b16 %v464
          %v603 = vunpack.c.l.b16 %v465
          %v604 = vunpack.c.l.b16 %v466
          %v605 = vunpack.c.l.b16 %v467
          %v606 = vunpack.c.l.b16 %v468
          %v607 = vunpack.c.l.b16 %v469
          %v608 = vunpack.c.l.b16 %v470
          %v609 = vunpack.c.l.b16 %v471
          %v610 = vunpack.c.l.b16 %v472
          %v611 = vunpack.c.l.b16 %v473
          %v612 = vunpack.c.l.b16 %v474
          %v613 = vunpack.c.l.b16 %v475
          %v614 = vunpack.c.l.b16 %v476
          %v615 = vpack.c.b16 %v600, %v599
          %v616 = vpack.c.b16 %v602, %v601
          %v617 = vpack.c.b16 %v604, %v603
          %v618 = vpack.c.b16 %v606, %v605
          %v619 = vpack.c.b16 %v608, %v607
          %v620 = vpack.c.b16 %v610, %v609
          %v621 = vpack.c.b16 %v612, %v611
          %v622 = vpack.c.b16 %v614, %v613
          %631 = vmatprep.subr.bf16.mxu0 0
          %632 = vmatpush1.bf16.xpose.msra.mxu0 %v615
          %633 = vmatprep.subr.bf16.mxu0 0
          %634 = vmatpush1.bf16.xpose.msra.mxu0 %v616
          %635 = vmatprep.subr.bf16.mxu0 0
          %636 = vmatpush1.bf16.xpose.msra.mxu0 %v617
          %637 = vmatprep.subr.bf16.mxu0 0
          %638 = vmatpush1.bf16.xpose.msra.mxu0 %v618
          %639 = vmatprep.subr.bf16.mxu0 0
          %640 = vmatpush1.bf16.xpose.msra.mxu0 %v619
          %641 = vmatprep.subr.bf16.mxu0 0
          %642 = vmatpush1.bf16.xpose.msra.mxu0 %v620
          %643 = vmatprep.subr.bf16.mxu0 0
          %644 = vmatpush1.bf16.xpose.msra.mxu0 %v621
          %645 = vmatprep.subr.bf16.mxu0 0
          %646 = vmatpush1.bf16.xpose.msra.mxu0 %v622
          %647 = vmatprep.subr.bf16.mxu0 0
          %648 = vmatpush1.bf16.xpose.msra.mxu0 0
          %649 = vmatprep.subr.bf16.mxu0 0
          %650 = vmatpush1.bf16.xpose.msra.mxu0 0
          %651 = vmatprep.subr.bf16.mxu0 0
          %652 = vmatpush1.bf16.xpose.msra.mxu0 0
          %653 = vmatprep.subr.bf16.mxu0 0
          %654 = vmatpush1.bf16.xpose.msra.mxu0 0
          %655 = vmatprep.subr.bf16.mxu0 0
          %656 = vmatpush1.bf16.xpose.msra.mxu0 0
          %657 = vmatprep.subr.bf16.mxu0 0
          %658 = vmatpush1.bf16.xpose.msra.mxu0 0
          %659 = vmatprep.subr.bf16.mxu0 0
          %660 = vmatpush1.bf16.xpose.msra.mxu0 0
          %661 = vmatprep.subr.bf16.mxu0 0
          %662 = vmatpush1.bf16.xpose.msra.mxu0 0
          %663 = vmatprep.mubr.bf16.mxu0 0
          %664 = vmatmul.mubr.bf16.gmra.mrb[0].mxu0 %v581
          %v665 = vpop.f32.mrb[0].mxu0
          %v666 = vadd.f32 %v542, %v665
          %v667 = vpop.f32.mrb[0].mxu0
          %v668 = vpop.f32.mrb[0].mxu0
          %v669 = vpop.f32.mrb[0].mxu0
          %670 = vdwg.mxu0
          %671 = vst [vmem:[#allocation2] sm:$0xff] %v666
          %672 = vst [vmem:[#allocation16] sm:$0xff] %v666
          %vm673 = vcmask 7168
          %674 = vst.msk [vmem:[#allocation3] sm:$0xff] %vm673, -inf
          %675 = vst.msk [vmem:[#allocation4] sm:$0xff] %vm673, 0.0
          %676 = vst.msk [vmem:[#allocation5] sm:$0xff] %vm673, 0.0
        $region64: #{tpu_custom_call.1} parent=39 // pred_fallthru
          _
        %v677 = vld [vmem:[%s412] sm:$0x1]
        %v678 = vld [vmem:[%s412 + $0x8] sm:$0x1]
        %v679 = vld [vmem:[%s412 + $0x10] sm:$0x1]
        %v680 = vld [vmem:[%s412 + $0x18] sm:$0x1]
        %v681 = vld [vmem:[%s412 + $0x20] sm:$0x1]
        %v682 = vld [vmem:[%s412 + $0x28] sm:$0x1]
        %v683 = vld [vmem:[%s412 + $0x30] sm:$0x1]
        %v684 = vld [vmem:[%s412 + $0x38] sm:$0x1]
        %v685 = vld [vmem:[%s412 + $0x40] sm:$0x1]
        %v686 = vld [vmem:[%s412 + $0x48] sm:$0x1]
        %v687 = vld [vmem:[%s412 + $0x50] sm:$0x1]
        %v688 = vld [vmem:[%s412 + $0x58] sm:$0x1]
        %v689 = vld [vmem:[%s412 + $0x60] sm:$0x1]
        %v690 = vld [vmem:[%s412 + $0x68] sm:$0x1]
        %v691 = vld [vmem:[%s412 + $0x70] sm:$0x1]
        %v692 = vld [vmem:[%s412 + $0x78] sm:$0x1]
        %v693 = vld [vmem:[%s412 + $0x80] sm:$0x1]
        %v694 = vld [vmem:[%s412 + $0x88] sm:$0x1]
        %v695 = vld [vmem:[%s412 + $0x90] sm:$0x1]
        %v696 = vld [vmem:[%s412 + $0x98] sm:$0x1]
        %v697 = vld [vmem:[%s412 + $0xa0] sm:$0x1]
        %v698 = vld [vmem:[%s412 + $0xa8] sm:$0x1]
        %v699 = vld [vmem:[%s412 + $0xb0] sm:$0x1]
        %v700 = vld [vmem:[%s412 + $0xb8] sm:$0x1]
        %v701 = vld [vmem:[%s412 + $0xc0] sm:$0x1]
        %v702 = vld [vmem:[%s412 + $0xc8] sm:$0x1]
        %v703 = vld [vmem:[%s412 + $0xd0] sm:$0x1]
        %v704 = vld [vmem:[%s412 + $0xd8] sm:$0x1]
        %v705 = vld [vmem:[%s412 + $0xe0] sm:$0x1]
        %v706 = vld [vmem:[%s412 + $0xe8] sm:$0x1]
        %v707 = vld [vmem:[%s412 + $0xf0] sm:$0x1]
        %v708 = vld [vmem:[%s412 + $0xf8] sm:$0x1]
        %v709 = vld [vmem:[%s412 + $0x100] sm:$0x1]
        %v710 = vld [vmem:[%s412 + $0x108] sm:$0x1]
        %v711 = vld [vmem:[%s412 + $0x110] sm:$0x1]
        %v712 = vld [vmem:[%s412 + $0x118] sm:$0x1]
        %v713 = vld [vmem:[%s412 + $0x120] sm:$0x1]
        %v714 = vld [vmem:[%s412 + $0x128] sm:$0x1]
        %v715 = vld [vmem:[%s412 + $0x130] sm:$0x1]
        %v716 = vld [vmem:[%s412 + $0x138] sm:$0x1]
        %v717 = vld [vmem:[%s412 + $0x140] sm:$0x1]
        %v718 = vld [vmem:[%s412 + $0x148] sm:$0x1]
        %v719 = vld [vmem:[%s412 + $0x150] sm:$0x1]
        %v720 = vld [vmem:[%s412 + $0x158] sm:$0x1]
        %v721 = vld [vmem:[%s412 + $0x160] sm:$0x1]
        %v722 = vld [vmem:[%s412 + $0x168] sm:$0x1]
        %v723 = vld [vmem:[%s412 + $0x170] sm:$0x1]
        %v724 = vld [vmem:[%s412 + $0x178] sm:$0x1]
        %v725 = vld [vmem:[%s412 + $0x180] sm:$0x1]
        %v726 = vld [vmem:[%s412 + $0x188] sm:$0x1]
        %v727 = vld [vmem:[%s412 + $0x190] sm:$0x1]
        %v728 = vld [vmem:[%s412 + $0x198] sm:$0x1]
        %v729 = vld [vmem:[%s412 + $0x1a0] sm:$0x1]
        %v730 = vld [vmem:[%s412 + $0x1a8] sm:$0x1]
        %v731 = vld [vmem:[%s412 + $0x1b0] sm:$0x1]
        %v732 = vld [vmem:[%s412 + $0x1b8] sm:$0x1]
        %v733 = vld [vmem:[%s412 + $0x1c0] sm:$0x1]
        %v734 = vld [vmem:[%s412 + $0x1c8] sm:$0x1]
        %v735 = vld [vmem:[%s412 + $0x1d0] sm:$0x1]
        %v736 = vld [vmem:[%s412 + $0x1d8] sm:$0x1]
        %v737 = vld [vmem:[%s412 + $0x1e0] sm:$0x1]
        %v738 = vld [vmem:[%s412 + $0x1e8] sm:$0x1]
        %v739 = vld [vmem:[%s412 + $0x1f0] sm:$0x1]
        %v740 = vld [vmem:[%s412 + $0x1f8] sm:$0x1]
        %v741 = vld [vmem:[%s412 + $0x200] sm:$0x1]
        %v742 = vld [vmem:[%s412 + $0x208] sm:$0x1]
        %v743 = vld [vmem:[%s412 + $0x210] sm:$0x1]
        %v744 = vld [vmem:[%s412 + $0x218] sm:$0x1]
        %v745 = vld [vmem:[%s412 + $0x220] sm:$0x1]
        %v746 = vld [vmem:[%s412 + $0x228] sm:$0x1]
        %v747 = vld [vmem:[%s412 + $0x230] sm:$0x1]
        %v748 = vld [vmem:[%s412 + $0x238] sm:$0x1]
        %v749 = vld [vmem:[%s412 + $0x240] sm:$0x1]
        %v750 = vld [vmem:[%s412 + $0x248] sm:$0x1]
        %v751 = vld [vmem:[%s412 + $0x250] sm:$0x1]
        %v752 = vld [vmem:[%s412 + $0x258] sm:$0x1]
        %v753 = vld [vmem:[%s412 + $0x260] sm:$0x1]
        %v754 = vld [vmem:[%s412 + $0x268] sm:$0x1]
        %v755 = vld [vmem:[%s412 + $0x270] sm:$0x1]
        %v756 = vld [vmem:[%s412 + $0x278] sm:$0x1]
        %v757 = vld [vmem:[%s412 + $0x280] sm:$0x1]
        %v758 = vld [vmem:[%s412 + $0x288] sm:$0x1]
        %v759 = vld [vmem:[%s412 + $0x290] sm:$0x1]
        %v760 = vld [vmem:[%s412 + $0x298] sm:$0x1]
        %v761 = vld [vmem:[%s412 + $0x2a0] sm:$0x1]
        %v762 = vld [vmem:[%s412 + $0x2a8] sm:$0x1]
        %v763 = vld [vmem:[%s412 + $0x2b0] sm:$0x1]
        %v764 = vld [vmem:[%s412 + $0x2b8] sm:$0x1]
        %v765 = vld [vmem:[%s412 + $0x2c0] sm:$0x1]
        %v766 = vld [vmem:[%s412 + $0x2c8] sm:$0x1]
        %v767 = vld [vmem:[%s412 + $0x2d0] sm:$0x1]
        %v768 = vld [vmem:[%s412 + $0x2d8] sm:$0x1]
        %v769 = vld [vmem:[%s412 + $0x2e0] sm:$0x1]
        %v770 = vld [vmem:[%s412 + $0x2e8] sm:$0x1]
        %v771 = vld [vmem:[%s412 + $0x2f0] sm:$0x1]
        %v772 = vld [vmem:[%s412 + $0x2f8] sm:$0x1]
        %v773 = vld [vmem:[%s412 + $0x300] sm:$0x1]
        %v774 = vld [vmem:[%s412 + $0x308] sm:$0x1]
        %v775 = vld [vmem:[%s412 + $0x310] sm:$0x1]
        %v776 = vld [vmem:[%s412 + $0x318] sm:$0x1]
        %v777 = vld [vmem:[%s412 + $0x320] sm:$0x1]
        %v778 = vld [vmem:[%s412 + $0x328] sm:$0x1]
        %v779 = vld [vmem:[%s412 + $0x330] sm:$0x1]
        %v780 = vld [vmem:[%s412 + $0x338] sm:$0x1]
        %v781 = vld [vmem:[%s412 + $0x340] sm:$0x1]
        %v782 = vld [vmem:[%s412 + $0x348] sm:$0x1]
        %v783 = vld [vmem:[%s412 + $0x350] sm:$0x1]
        %v784 = vld [vmem:[%s412 + $0x358] sm:$0x1]
        %v785 = vld [vmem:[%s412 + $0x360] sm:$0x1]
        %v786 = vld [vmem:[%s412 + $0x368] sm:$0x1]
        %v787 = vld [vmem:[%s412 + $0x370] sm:$0x1]
        %v788 = vld [vmem:[%s412 + $0x378] sm:$0x1]
        %v789 = vld [vmem:[%s412 + $0x380] sm:$0x1]
        %v790 = vld [vmem:[%s412 + $0x388] sm:$0x1]
        %v791 = vld [vmem:[%s412 + $0x390] sm:$0x1]
        %v792 = vld [vmem:[%s412 + $0x398] sm:$0x1]
        %v793 = vld [vmem:[%s412 + $0x3a0] sm:$0x1]
        %v794 = vld [vmem:[%s412 + $0x3a8] sm:$0x1]
        %v795 = vld [vmem:[%s412 + $0x3b0] sm:$0x1]
        %v796 = vld [vmem:[%s412 + $0x3b8] sm:$0x1]
        %v797 = vld [vmem:[%s412 + $0x3c0] sm:$0x1]
        %v798 = vld [vmem:[%s412 + $0x3c8] sm:$0x1]
        %v799 = vld [vmem:[%s412 + $0x3d0] sm:$0x1]
        %v800 = vld [vmem:[%s412 + $0x3d8] sm:$0x1]
        %v801 = vld [vmem:[%s412 + $0x3e0] sm:$0x1]
        %v802 = vld [vmem:[%s412 + $0x3e8] sm:$0x1]
        %v803 = vld [vmem:[%s412 + $0x3f0] sm:$0x1]
        %v804 = vld [vmem:[%s412 + $0x3f8] sm:$0x1]
        %v806 = vlaneseq
        %v807 = vshrl.u32 %v806, 7
        %v808 = vsub.s32 0, %v807
        %v809 = vrot.slane %v477, %v808
        %v939 = vunpack.c.l.b16 %v677
        %v940 = vunpack.c.l.b16 %v678
        %v941 = vunpack.c.l.b16 %v679
        %v942 = vunpack.c.l.b16 %v680
        %v943 = vunpack.c.l.b16 %v681
        %v944 = vunpack.c.l.b16 %v682
        %v945 = vunpack.c.l.b16 %v683
        %v946 = vunpack.c.l.b16 %v684
        %v947 = vunpack.c.l.b16 %v685
        %v948 = vunpack.c.l.b16 %v686
        %v949 = vunpack.c.l.b16 %v687
        %v950 = vunpack.c.l.b16 %v688
        %v951 = vunpack.c.l.b16 %v689
        %v952 = vunpack.c.l.b16 %v690
        %v953 = vunpack.c.l.b16 %v691
        %v954 = vunpack.c.l.b16 %v692
        %v955 = vunpack.c.l.b16 %v693
        %v956 = vunpack.c.l.b16 %v694
        %v957 = vunpack.c.l.b16 %v695
        %v958 = vunpack.c.l.b16 %v696
        %v959 = vunpack.c.l.b16 %v697
        %v960 = vunpack.c.l.b16 %v698
        %v961 = vunpack.c.l.b16 %v699
        %v962 = vunpack.c.l.b16 %v700
        %v963 = vunpack.c.l.b16 %v701
        %v964 = vunpack.c.l.b16 %v702
        %v965 = vunpack.c.l.b16 %v703
        %v966 = vunpack.c.l.b16 %v704
        %v967 = vunpack.c.l.b16 %v705
        %v968 = vunpack.c.l.b16 %v706
        %v969 = vunpack.c.l.b16 %v707
        %v970 = vunpack.c.l.b16 %v708
        %v971 = vunpack.c.l.b16 %v709
        %v972 = vunpack.c.l.b16 %v710
        %v973 = vunpack.c.l.b16 %v711
        %v974 = vunpack.c.l.b16 %v712
        %v975 = vunpack.c.l.b16 %v713
        %v976 = vunpack.c.l.b16 %v714
        %v977 = vunpack.c.l.b16 %v715
        %v978 = vunpack.c.l.b16 %v716
        %v979 = vunpack.c.l.b16 %v717
        %v980 = vunpack.c.l.b16 %v718
        %v981 = vunpack.c.l.b16 %v719
        %v982 = vunpack.c.l.b16 %v720
        %v983 = vunpack.c.l.b16 %v721
        %v984 = vunpack.c.l.b16 %v722
        %v985 = vunpack.c.l.b16 %v723
        %v986 = vunpack.c.l.b16 %v724
        %v987 = vunpack.c.l.b16 %v725
        %v988 = vunpack.c.l.b16 %v726
        %v989 = vunpack.c.l.b16 %v727
        %v990 = vunpack.c.l.b16 %v728
        %v991 = vunpack.c.l.b16 %v729
        %v992 = vunpack.c.l.b16 %v730
        %v993 = vunpack.c.l.b16 %v731
        %v994 = vunpack.c.l.b16 %v732
        %v995 = vunpack.c.l.b16 %v733
        %v996 = vunpack.c.l.b16 %v734
        %v997 = vunpack.c.l.b16 %v735
        %v998 = vunpack.c.l.b16 %v736
        %v999 = vunpack.c.l.b16 %v737
        %v1000 = vunpack.c.l.b16 %v738
        %v1001 = vunpack.c.l.b16 %v739
        %v1002 = vunpack.c.l.b16 %v740
        %v1003 = vunpack.c.l.b16 %v741
        %v1004 = vunpack.c.l.b16 %v742
        %v1005 = vunpack.c.l.b16 %v743
        %v1006 = vunpack.c.l.b16 %v744
        %v1007 = vunpack.c.l.b16 %v745
        %v1008 = vunpack.c.l.b16 %v746
        %v1009 = vunpack.c.l.b16 %v747
        %v1010 = vunpack.c.l.b16 %v748
        %v1011 = vunpack.c.l.b16 %v749
        %v1012 = vunpack.c.l.b16 %v750
        %v1013 = vunpack.c.l.b16 %v751
        %v1014 = vunpack.c.l.b16 %v752
        %v1015 = vunpack.c.l.b16 %v753
        %v1016 = vunpack.c.l.b16 %v754
        %v1017 = vunpack.c.l.b16 %v755
        %v1018 = vunpack.c.l.b16 %v756
        %v1019 = vunpack.c.l.b16 %v757
        %v1020 = vunpack.c.l.b16 %v758
        %v1021 = vunpack.c.l.b16 %v759
        %v1022 = vunpack.c.l.b16 %v760
        %v1023 = vunpack.c.l.b16 %v761
        %v1024 = vunpack.c.l.b16 %v762
        %v1025 = vunpack.c.l.b16 %v763
        %v1026 = vunpack.c.l.b16 %v764
        %v1027 = vunpack.c.l.b16 %v765
        %v1028 = vunpack.c.l.b16 %v766
        %v1029 = vunpack.c.l.b16 %v767
        %v1030 = vunpack.c.l.b16 %v768
        %v1031 = vunpack.c.l.b16 %v769
        %v1032 = vunpack.c.l.b16 %v770
        %v1033 = vunpack.c.l.b16 %v771
        %v1034 = vunpack.c.l.b16 %v772
        %v1035 = vunpack.c.l.b16 %v773
        %v1036 = vunpack.c.l.b16 %v774
        %v1037 = vunpack.c.l.b16 %v775
        %v1038 = vunpack.c.l.b16 %v776
        %v1039 = vunpack.c.l.b16 %v777
        %v1040 = vunpack.c.l.b16 %v778
        %v1041 = vunpack.c.l.b16 %v779
        %v1042 = vunpack.c.l.b16 %v780
        %v1043 = vunpack.c.l.b16 %v781
        %v1044 = vunpack.c.l.b16 %v782
        %v1045 = vunpack.c.l.b16 %v783
        %v1046 = vunpack.c.l.b16 %v784
        %v1047 = vunpack.c.l.b16 %v785
        %v1048 = vunpack.c.l.b16 %v786
        %v1049 = vunpack.c.l.b16 %v787
        %v1050 = vunpack.c.l.b16 %v788
        %v1051 = vunpack.c.l.b16 %v789
        %v1052 = vunpack.c.l.b16 %v790
        %v1053 = vunpack.c.l.b16 %v791
        %v1054 = vunpack.c.l.b16 %v792
        %v1055 = vunpack.c.l.b16 %v793
        %v1056 = vunpack.c.l.b16 %v794
        %v1057 = vunpack.c.l.b16 %v795
        %v1058 = vunpack.c.l.b16 %v796
        %v1059 = vunpack.c.l.b16 %v797
        %v1060 = vunpack.c.l.b16 %v798
        %v1061 = vunpack.c.l.b16 %v799
        %v1062 = vunpack.c.l.b16 %v800
        %v1063 = vunpack.c.l.b16 %v801
        %v1064 = vunpack.c.l.b16 %v802
        %v1065 = vunpack.c.l.b16 %v803
        %v1066 = vunpack.c.l.b16 %v804
        %v1067 = vpack.c.b16 %v939, %v939
        %v1068 = vpack.c.b16 %v940, %v940
        %v1069 = vpack.c.b16 %v941, %v941
        %v1070 = vpack.c.b16 %v942, %v942
        %v1071 = vpack.c.b16 %v943, %v943
        %v1072 = vpack.c.b16 %v944, %v944
        %v1073 = vpack.c.b16 %v945, %v945
        %v1074 = vpack.c.b16 %v946, %v946
        %v1075 = vpack.c.b16 %v947, %v947
        %v1076 = vpack.c.b16 %v948, %v948
        %v1077 = vpack.c.b16 %v949, %v949
        %v1078 = vpack.c.b16 %v950, %v950
        %v1079 = vpack.c.b16 %v951, %v951
        %v1080 = vpack.c.b16 %v952, %v952
        %v1081 = vpack.c.b16 %v953, %v953
        %v1082 = vpack.c.b16 %v954, %v954
        %v1083 = vpack.c.b16 %v955, %v955
        %v1084 = vpack.c.b16 %v956, %v956
        %v1085 = vpack.c.b16 %v957, %v957
        %v1086 = vpack.c.b16 %v958, %v958
        %v1087 = vpack.c.b16 %v959, %v959
        %v1088 = vpack.c.b16 %v960, %v960
        %v1089 = vpack.c.b16 %v961, %v961
        %v1090 = vpack.c.b16 %v962, %v962
        %v1091 = vpack.c.b16 %v963, %v963
        %v1092 = vpack.c.b16 %v964, %v964
        %v1093 = vpack.c.b16 %v965, %v965
        %v1094 = vpack.c.b16 %v966, %v966
        %v1095 = vpack.c.b16 %v967, %v967
        %v1096 = vpack.c.b16 %v968, %v968
        %v1097 = vpack.c.b16 %v969, %v969
        %v1098 = vpack.c.b16 %v970, %v970
        %v1099 = vpack.c.b16 %v971, %v971
        %v1100 = vpack.c.b16 %v972, %v972
        %v1101 = vpack.c.b16 %v973, %v973
        %v1102 = vpack.c.b16 %v974, %v974
        %v1103 = vpack.c.b16 %v975, %v975
        %v1104 = vpack.c.b16 %v976, %v976
        %v1105 = vpack.c.b16 %v977, %v977
        %v1106 = vpack.c.b16 %v978, %v978
        %v1107 = vpack.c.b16 %v979, %v979
        %v1108 = vpack.c.b16 %v980, %v980
        %v1109 = vpack.c.b16 %v981, %v981
        %v1110 = vpack.c.b16 %v982, %v982
        %v1111 = vpack.c.b16 %v983, %v983
        %v1112 = vpack.c.b16 %v984, %v984
        %v1113 = vpack.c.b16 %v985, %v985
        %v1114 = vpack.c.b16 %v986, %v986
        %v1115 = vpack.c.b16 %v987, %v987
        %v1116 = vpack.c.b16 %v988, %v988
        %v1117 = vpack.c.b16 %v989, %v989
        %v1118 = vpack.c.b16 %v990, %v990
        %v1119 = vpack.c.b16 %v991, %v991
        %v1120 = vpack.c.b16 %v992, %v992
        %v1121 = vpack.c.b16 %v993, %v993
        %v1122 = vpack.c.b16 %v994, %v994
        %v1123 = vpack.c.b16 %v995, %v995
        %v1124 = vpack.c.b16 %v996, %v996
        %v1125 = vpack.c.b16 %v997, %v997
        %v1126 = vpack.c.b16 %v998, %v998
        %v1127 = vpack.c.b16 %v999, %v999
        %v1128 = vpack.c.b16 %v1000, %v1000
        %v1129 = vpack.c.b16 %v1001, %v1001
        %v1130 = vpack.c.b16 %v1002, %v1002
        %v1131 = vpack.c.b16 %v1003, %v1003
        %v1132 = vpack.c.b16 %v1004, %v1004
        %v1133 = vpack.c.b16 %v1005, %v1005
        %v1134 = vpack.c.b16 %v1006, %v1006
        %v1135 = vpack.c.b16 %v1007, %v1007
        %v1136 = vpack.c.b16 %v1008, %v1008
        %v1137 = vpack.c.b16 %v1009, %v1009
        %v1138 = vpack.c.b16 %v1010, %v1010
        %v1139 = vpack.c.b16 %v1011, %v1011
        %v1140 = vpack.c.b16 %v1012, %v1012
        %v1141 = vpack.c.b16 %v1013, %v1013
        %v1142 = vpack.c.b16 %v1014, %v1014
        %v1143 = vpack.c.b16 %v1015, %v1015
        %v1144 = vpack.c.b16 %v1016, %v1016
        %v1145 = vpack.c.b16 %v1017, %v1017
        %v1146 = vpack.c.b16 %v1018, %v1018
        %v1147 = vpack.c.b16 %v1019, %v1019
        %v1148 = vpack.c.b16 %v1020, %v1020
        %v1149 = vpack.c.b16 %v1021, %v1021
        %v1150 = vpack.c.b16 %v1022, %v1022
        %v1151 = vpack.c.b16 %v1023, %v1023
        %v1152 = vpack.c.b16 %v1024, %v1024
        %v1153 = vpack.c.b16 %v1025, %v1025
        %v1154 = vpack.c.b16 %v1026, %v1026
        %v1155 = vpack.c.b16 %v1027, %v1027
        %v1156 = vpack.c.b16 %v1028, %v1028
        %v1157 = vpack.c.b16 %v1029, %v1029
        %v1158 = vpack.c.b16 %v1030, %v1030
        %v1159 = vpack.c.b16 %v1031, %v1031
        %v1160 = vpack.c.b16 %v1032, %v1032
        %v1161 = vpack.c.b16 %v1033, %v1033
        %v1162 = vpack.c.b16 %v1034, %v1034
        %v1163 = vpack.c.b16 %v1035, %v1035
        %v1164 = vpack.c.b16 %v1036, %v1036
        %v1165 = vpack.c.b16 %v1037, %v1037
        %v1166 = vpack.c.b16 %v1038, %v1038
        %v1167 = vpack.c.b16 %v1039, %v1039
        %v1168 = vpack.c.b16 %v1040, %v1040
        %v1169 = vpack.c.b16 %v1041, %v1041
        %v1170 = vpack.c.b16 %v1042, %v1042
        %v1171 = vpack.c.b16 %v1043, %v1043
        %v1172 = vpack.c.b16 %v1044, %v1044
        %v1173 = vpack.c.b16 %v1045, %v1045
        %v1174 = vpack.c.b16 %v1046, %v1046
        %v1175 = vpack.c.b16 %v1047, %v1047
        %v1176 = vpack.c.b16 %v1048, %v1048
        %v1177 = vpack.c.b16 %v1049, %v1049
        %v1178 = vpack.c.b16 %v1050, %v1050
        %v1179 = vpack.c.b16 %v1051, %v1051
        %v1180 = vpack.c.b16 %v1052, %v1052
        %v1181 = vpack.c.b16 %v1053, %v1053
        %v1182 = vpack.c.b16 %v1054, %v1054
        %v1183 = vpack.c.b16 %v1055, %v1055
        %v1184 = vpack.c.b16 %v1056, %v1056
        %v1185 = vpack.c.b16 %v1057, %v1057
        %v1186 = vpack.c.b16 %v1058, %v1058
        %v1187 = vpack.c.b16 %v1059, %v1059
        %v1188 = vpack.c.b16 %v1060, %v1060
        %v1189 = vpack.c.b16 %v1061, %v1061
        %v1190 = vpack.c.b16 %v1062, %v1062
        %v1191 = vpack.c.b16 %v1063, %v1063
        %v1192 = vpack.c.b16 %v1064, %v1064
        %v1193 = vpack.c.b16 %v1065, %v1065
        %v1194 = vpack.c.b16 %v1066, %v1066
        %v1195 = vunpack.c.l.b16 %v1067
        %v1196 = vunpack.c.l.b16 %v1068
        %v1197 = vunpack.c.l.b16 %v1069
        %v1198 = vunpack.c.l.b16 %v1070
        %v1199 = vunpack.c.l.b16 %v1071
        %v1200 = vunpack.c.l.b16 %v1072
        %v1201 = vunpack.c.l.b16 %v1073
        %v1202 = vunpack.c.l.b16 %v1074
        %v1203 = vunpack.c.l.b16 %v1075
        %v1204 = vunpack.c.l.b16 %v1076
        %v1205 = vunpack.c.l.b16 %v1077
        %v1206 = vunpack.c.l.b16 %v1078
        %v1207 = vunpack.c.l.b16 %v1079
        %v1208 = vunpack.c.l.b16 %v1080
        %v1209 = vunpack.c.l.b16 %v1081
        %v1210 = vunpack.c.l.b16 %v1082
        %v1211 = vunpack.c.l.b16 %v1083
        %v1212 = vunpack.c.l.b16 %v1084
        %v1213 = vunpack.c.l.b16 %v1085
        %v1214 = vunpack.c.l.b16 %v1086
        %v1215 = vunpack.c.l.b16 %v1087
        %v1216 = vunpack.c.l.b16 %v1088
        %v1217 = vunpack.c.l.b16 %v1089
        %v1218 = vunpack.c.l.b16 %v1090
        %v1219 = vunpack.c.l.b16 %v1091
        %v1220 = vunpack.c.l.b16 %v1092
        %v1221 = vunpack.c.l.b16 %v1093
        %v1222 = vunpack.c.l.b16 %v1094
        %v1223 = vunpack.c.l.b16 %v1095
        %v1224 = vunpack.c.l.b16 %v1096
        %v1225 = vunpack.c.l.b16 %v1097
        %v1226 = vunpack.c.l.b16 %v1098
        %v1227 = vunpack.c.l.b16 %v1099
        %v1228 = vunpack.c.l.b16 %v1100
        %v1229 = vunpack.c.l.b16 %v1101
        %v1230 = vunpack.c.l.b16 %v1102
        %v1231 = vunpack.c.l.b16 %v1103
        %v1232 = vunpack.c.l.b16 %v1104
        %v1233 = vunpack.c.l.b16 %v1105
        %v1234 = vunpack.c.l.b16 %v1106
        %v1235 = vunpack.c.l.b16 %v1107
        %v1236 = vunpack.c.l.b16 %v1108
        %v1237 = vunpack.c.l.b16 %v1109
        %v1238 = vunpack.c.l.b16 %v1110
        %v1239 = vunpack.c.l.b16 %v1111
        %v1240 = vunpack.c.l.b16 %v1112
        %v1241 = vunpack.c.l.b16 %v1113
        %v1242 = vunpack.c.l.b16 %v1114
        %v1243 = vunpack.c.l.b16 %v1115
        %v1244 = vunpack.c.l.b16 %v1116
        %v1245 = vunpack.c.l.b16 %v1117
        %v1246 = vunpack.c.l.b16 %v1118
        %v1247 = vunpack.c.l.b16 %v1119
        %v1248 = vunpack.c.l.b16 %v1120
        %v1249 = vunpack.c.l.b16 %v1121
        %v1250 = vunpack.c.l.b16 %v1122
        %v1251 = vunpack.c.l.b16 %v1123
        %v1252 = vunpack.c.l.b16 %v1124
        %v1253 = vunpack.c.l.b16 %v1125
        %v1254 = vunpack.c.l.b16 %v1126
        %v1255 = vunpack.c.l.b16 %v1127
        %v1256 = vunpack.c.l.b16 %v1128
        %v1257 = vunpack.c.l.b16 %v1129
        %v1258 = vunpack.c.l.b16 %v1130
        %v1259 = vunpack.c.l.b16 %v1131
        %v1260 = vunpack.c.l.b16 %v1132
        %v1261 = vunpack.c.l.b16 %v1133
        %v1262 = vunpack.c.l.b16 %v1134
        %v1263 = vunpack.c.l.b16 %v1135
        %v1264 = vunpack.c.l.b16 %v1136
        %v1265 = vunpack.c.l.b16 %v1137
        %v1266 = vunpack.c.l.b16 %v1138
        %v1267 = vunpack.c.l.b16 %v1139
        %v1268 = vunpack.c.l.b16 %v1140
        %v1269 = vunpack.c.l.b16 %v1141
        %v1270 = vunpack.c.l.b16 %v1142
        %v1271 = vunpack.c.l.b16 %v1143
        %v1272 = vunpack.c.l.b16 %v1144
        %v1273 = vunpack.c.l.b16 %v1145
        %v1274 = vunpack.c.l.b16 %v1146
        %v1275 = vunpack.c.l.b16 %v1147
        %v1276 = vunpack.c.l.b16 %v1148
        %v1277 = vunpack.c.l.b16 %v1149
        %v1278 = vunpack.c.l.b16 %v1150
        %v1279 = vunpack.c.l.b16 %v1151
        %v1280 = vunpack.c.l.b16 %v1152
        %v1281 = vunpack.c.l.b16 %v1153
        %v1282 = vunpack.c.l.b16 %v1154
        %v1283 = vunpack.c.l.b16 %v1155
        %v1284 = vunpack.c.l.b16 %v1156
        %v1285 = vunpack.c.l.b16 %v1157
        %v1286 = vunpack.c.l.b16 %v1158
        %v1287 = vunpack.c.l.b16 %v1159
        %v1288 = vunpack.c.l.b16 %v1160
        %v1289 = vunpack.c.l.b16 %v1161
        %v1290 = vunpack.c.l.b16 %v1162
        %v1291 = vunpack.c.l.b16 %v1163
        %v1292 = vunpack.c.l.b16 %v1164
        %v1293 = vunpack.c.l.b16 %v1165
        %v1294 = vunpack.c.l.b16 %v1166
        %v1295 = vunpack.c.l.b16 %v1167
        %v1296 = vunpack.c.l.b16 %v1168
        %v1297 = vunpack.c.l.b16 %v1169
        %v1298 = vunpack.c.l.b16 %v1170
        %v1299 = vunpack.c.l.b16 %v1171
        %v1300 = vunpack.c.l.b16 %v1172
        %v1301 = vunpack.c.l.b16 %v1173
        %v1302 = vunpack.c.l.b16 %v1174
        %v1303 = vunpack.c.l.b16 %v1175
        %v1304 = vunpack.c.l.b16 %v1176
        %v1305 = vunpack.c.l.b16 %v1177
        %v1306 = vunpack.c.l.b16 %v1178
        %v1307 = vunpack.c.l.b16 %v1179
        %v1308 = vunpack.c.l.b16 %v1180
        %v1309 = vunpack.c.l.b16 %v1181
        %v1310 = vunpack.c.l.b16 %v1182
        %v1311 = vunpack.c.l.b16 %v1183
        %v1312 = vunpack.c.l.b16 %v1184
        %v1313 = vunpack.c.l.b16 %v1185
        %v1314 = vunpack.c.l.b16 %v1186
        %v1315 = vunpack.c.l.b16 %v1187
        %v1316 = vunpack.c.l.b16 %v1188
        %v1317 = vunpack.c.l.b16 %v1189
        %v1318 = vunpack.c.l.b16 %v1190
        %v1319 = vunpack.c.l.b16 %v1191
        %v1320 = vunpack.c.l.b16 %v1192
        %v1321 = vunpack.c.l.b16 %v1193
        %v1322 = vunpack.c.l.b16 %v1194
        %v1323 = vrot.slane %v1196, 7
        %vm1324 = vcmask 1041409
        %v1325 = vsel %vm1324, %v1323, %v1195
        %v1326 = vrot.slane %v1197, 6
        %vm1327 = vcmask 1042434
        %v1328 = vsel %vm1327, %v1326, %v1325
        %v1329 = vrot.slane %v1198, 5
        %vm1330 = vcmask 1043459
        %v1331 = vsel %vm1330, %v1329, %v1328
        %v1332 = vrot.slane %v1199, 4
        %vm1333 = vcmask 1044484
        %v1334 = vsel %vm1333, %v1332, %v1331
        %v1335 = vrot.slane %v1200, 3
        %vm1336 = vcmask 1045509
        %v1337 = vsel %vm1336, %v1335, %v1334
        %v1338 = vrot.slane %v1201, 2
        %vm1339 = vcmask 1046534
        %v1340 = vsel %vm1339, %v1338, %v1337
        %v1341 = vrot.slane %v1202, 1
        %vm1342 = vcmask 1047559
        %v1343 = vsel %vm1342, %v1341, %v1340
        %v1344 = vrot.slane %v1204, 7
        %v1345 = vsel %vm1324, %v1344, %v1203
        %v1346 = vrot.slane %v1205, 6
        %v1347 = vsel %vm1327, %v1346, %v1345
        %v1348 = vrot.slane %v1206, 5
        %v1349 = vsel %vm1330, %v1348, %v1347
        %v1350 = vrot.slane %v1207, 4
        %v1351 = vsel %vm1333, %v1350, %v1349
        %v1352 = vrot.slane %v1208, 3
        %v1353 = vsel %vm1336, %v1352, %v1351
        %v1354 = vrot.slane %v1209, 2
        %v1355 = vsel %vm1339, %v1354, %v1353
        %v1356 = vrot.slane %v1210, 1
        %v1357 = vsel %vm1342, %v1356, %v1355
        %v1358 = vrot.slane %v1212, 7
        %v1359 = vsel %vm1324, %v1358, %v1211
        %v1360 = vrot.slane %v1213, 6
        %v1361 = vsel %vm1327, %v1360, %v1359
        %v1362 = vrot.slane %v1214, 5
        %v1363 = vsel %vm1330, %v1362, %v1361
        %v1364 = vrot.slane %v1215, 4
        %v1365 = vsel %vm1333, %v1364, %v1363
        %v1366 = vrot.slane %v1216, 3
        %v1367 = vsel %vm1336, %v1366, %v1365
        %v1368 = vrot.slane %v1217, 2
        %v1369 = vsel %vm1339, %v1368, %v1367
        %v1370 = vrot.slane %v1218, 1
        %v1371 = vsel %vm1342, %v1370, %v1369
        %v1372 = vrot.slane %v1220, 7
        %v1373 = vsel %vm1324, %v1372, %v1219
        %v1374 = vrot.slane %v1221, 6
        %v1375 = vsel %vm1327, %v1374, %v1373
        %v1376 = vrot.slane %v1222, 5
        %v1377 = vsel %vm1330, %v1376, %v1375
        %v1378 = vrot.slane %v1223, 4
        %v1379 = vsel %vm1333, %v1378, %v1377
        %v1380 = vrot.slane %v1224, 3
        %v1381 = vsel %vm1336, %v1380, %v1379
        %v1382 = vrot.slane %v1225, 2
        %v1383 = vsel %vm1339, %v1382, %v1381
        %v1384 = vrot.slane %v1226, 1
        %v1385 = vsel %vm1342, %v1384, %v1383
        %v1386 = vrot.slane %v1228, 7
        %v1387 = vsel %vm1324, %v1386, %v1227
        %v1388 = vrot.slane %v1229, 6
        %v1389 = vsel %vm1327, %v1388, %v1387
        %v1390 = vrot.slane %v1230, 5
        %v1391 = vsel %vm1330, %v1390, %v1389
        %v1392 = vrot.slane %v1231, 4
        %v1393 = vsel %vm1333, %v1392, %v1391
        %v1394 = vrot.slane %v1232, 3
        %v1395 = vsel %vm1336, %v1394, %v1393
        %v1396 = vrot.slane %v1233, 2
        %v1397 = vsel %vm1339, %v1396, %v1395
        %v1398 = vrot.slane %v1234, 1
        %v1399 = vsel %vm1342, %v1398, %v1397
        %v1400 = vrot.slane %v1236, 7
        %v1401 = vsel %vm1324, %v1400, %v1235
        %v1402 = vrot.slane %v1237, 6
        %v1403 = vsel %vm1327, %v1402, %v1401
        %v1404 = vrot.slane %v1238, 5
        %v1405 = vsel %vm1330, %v1404, %v1403
        %v1406 = vrot.slane %v1239, 4
        %v1407 = vsel %vm1333, %v1406, %v1405
        %v1408 = vrot.slane %v1240, 3
        %v1409 = vsel %vm1336, %v1408, %v1407
        %v1410 = vrot.slane %v1241, 2
        %v1411 = vsel %vm1339, %v1410, %v1409
        %v1412 = vrot.slane %v1242, 1
        %v1413 = vsel %vm1342, %v1412, %v1411
        %v1414 = vrot.slane %v1244, 7
        %v1415 = vsel %vm1324, %v1414, %v1243
        %v1416 = vrot.slane %v1245, 6
        %v1417 = vsel %vm1327, %v1416, %v1415
        %v1418 = vrot.slane %v1246, 5
        %v1419 = vsel %vm1330, %v1418, %v1417
        %v1420 = vrot.slane %v1247, 4
        %v1421 = vsel %vm1333, %v1420, %v1419
        %v1422 = vrot.slane %v1248, 3
        %v1423 = vsel %vm1336, %v1422, %v1421
        %v1424 = vrot.slane %v1249, 2
        %v1425 = vsel %vm1339, %v1424, %v1423
        %v1426 = vrot.slane %v1250, 1
        %v1427 = vsel %vm1342, %v1426, %v1425
        %v1428 = vrot.slane %v1252, 7
        %v1429 = vsel %vm1324, %v1428, %v1251
        %v1430 = vrot.slane %v1253, 6
        %v1431 = vsel %vm1327, %v1430, %v1429
        %v1432 = vrot.slane %v1254, 5
        %v1433 = vsel %vm1330, %v1432, %v1431
        %v1434 = vrot.slane %v1255, 4
        %v1435 = vsel %vm1333, %v1434, %v1433
        %v1436 = vrot.slane %v1256, 3
        %v1437 = vsel %vm1336, %v1436, %v1435
        %v1438 = vrot.slane %v1257, 2
        %v1439 = vsel %vm1339, %v1438, %v1437
        %v1440 = vrot.slane %v1258, 1
        %v1441 = vsel %vm1342, %v1440, %v1439
        %v1442 = vrot.slane %v1260, 7
        %v1443 = vsel %vm1324, %v1442, %v1259
        %v1444 = vrot.slane %v1261, 6
        %v1445 = vsel %vm1327, %v1444, %v1443
        %v1446 = vrot.slane %v1262, 5
        %v1447 = vsel %vm1330, %v1446, %v1445
        %v1448 = vrot.slane %v1263, 4
        %v1449 = vsel %vm1333, %v1448, %v1447
        %v1450 = vrot.slane %v1264, 3
        %v1451 = vsel %vm1336, %v1450, %v1449
        %v1452 = vrot.slane %v1265, 2
        %v1453 = vsel %vm1339, %v1452, %v1451
        %v1454 = vrot.slane %v1266, 1
        %v1455 = vsel %vm1342, %v1454, %v1453
        %v1456 = vrot.slane %v1268, 7
        %v1457 = vsel %vm1324, %v1456, %v1267
        %v1458 = vrot.slane %v1269, 6
        %v1459 = vsel %vm1327, %v1458, %v1457
        %v1460 = vrot.slane %v1270, 5
        %v1461 = vsel %vm1330, %v1460, %v1459
        %v1462 = vrot.slane %v1271, 4
        %v1463 = vsel %vm1333, %v1462, %v1461
        %v1464 = vrot.slane %v1272, 3
        %v1465 = vsel %vm1336, %v1464, %v1463
        %v1466 = vrot.slane %v1273, 2
        %v1467 = vsel %vm1339, %v1466, %v1465
        %v1468 = vrot.slane %v1274, 1
        %v1469 = vsel %vm1342, %v1468, %v1467
        %v1470 = vrot.slane %v1276, 7
        %v1471 = vsel %vm1324, %v1470, %v1275
        %v1472 = vrot.slane %v1277, 6
        %v1473 = vsel %vm1327, %v1472, %v1471
        %v1474 = vrot.slane %v1278, 5
        %v1475 = vsel %vm1330, %v1474, %v1473
        %v1476 = vrot.slane %v1279, 4
        %v1477 = vsel %vm1333, %v1476, %v1475
        %v1478 = vrot.slane %v1280, 3
        %v1479 = vsel %vm1336, %v1478, %v1477
        %v1480 = vrot.slane %v1281, 2
        %v1481 = vsel %vm1339, %v1480, %v1479
        %v1482 = vrot.slane %v1282, 1
        %v1483 = vsel %vm1342, %v1482, %v1481
        %v1484 = vrot.slane %v1284, 7
        %v1485 = vsel %vm1324, %v1484, %v1283
        %v1486 = vrot.slane %v1285, 6
        %v1487 = vsel %vm1327, %v1486, %v1485
        %v1488 = vrot.slane %v1286, 5
        %v1489 = vsel %vm1330, %v1488, %v1487
        %v1490 = vrot.slane %v1287, 4
        %v1491 = vsel %vm1333, %v1490, %v1489
        %v1492 = vrot.slane %v1288, 3
        %v1493 = vsel %vm1336, %v1492, %v1491
        %v1494 = vrot.slane %v1289, 2
        %v1495 = vsel %vm1339, %v1494, %v1493
        %v1496 = vrot.slane %v1290, 1
        %v1497 = vsel %vm1342, %v1496, %v1495
        %v1498 = vrot.slane %v1292, 7
        %v1499 = vsel %vm1324, %v1498, %v1291
        %v1500 = vrot.slane %v1293, 6
        %v1501 = vsel %vm1327, %v1500, %v1499
        %v1502 = vrot.slane %v1294, 5
        %v1503 = vsel %vm1330, %v1502, %v1501
        %v1504 = vrot.slane %v1295, 4
        %v1505 = vsel %vm1333, %v1504, %v1503
        %v1506 = vrot.slane %v1296, 3
        %v1507 = vsel %vm1336, %v1506, %v1505
        %v1508 = vrot.slane %v1297, 2
        %v1509 = vsel %vm1339, %v1508, %v1507
        %v1510 = vrot.slane %v1298, 1
        %v1511 = vsel %vm1342, %v1510, %v1509
        %v1512 = vrot.slane %v1300, 7
        %v1513 = vsel %vm1324, %v1512, %v1299
        %v1514 = vrot.slane %v1301, 6
        %v1515 = vsel %vm1327, %v1514, %v1513
        %v1516 = vrot.slane %v1302, 5
        %v1517 = vsel %vm1330, %v1516, %v1515
        %v1518 = vrot.slane %v1303, 4
        %v1519 = vsel %vm1333, %v1518, %v1517
        %v1520 = vrot.slane %v1304, 3
        %v1521 = vsel %vm1336, %v1520, %v1519
        %v1522 = vrot.slane %v1305, 2
        %v1523 = vsel %vm1339, %v1522, %v1521
        %v1524 = vrot.slane %v1306, 1
        %v1525 = vsel %vm1342, %v1524, %v1523
        %v1526 = vrot.slane %v1308, 7
        %v1527 = vsel %vm1324, %v1526, %v1307
        %v1528 = vrot.slane %v1309, 6
        %v1529 = vsel %vm1327, %v1528, %v1527
        %v1530 = vrot.slane %v1310, 5
        %v1531 = vsel %vm1330, %v1530, %v1529
        %v1532 = vrot.slane %v1311, 4
        %v1533 = vsel %vm1333, %v1532, %v1531
        %v1534 = vrot.slane %v1312, 3
        %v1535 = vsel %vm1336, %v1534, %v1533
        %v1536 = vrot.slane %v1313, 2
        %v1537 = vsel %vm1339, %v1536, %v1535
        %v1538 = vrot.slane %v1314, 1
        %v1539 = vsel %vm1342, %v1538, %v1537
        %v1540 = vrot.slane %v1316, 7
        %v1541 = vsel %vm1324, %v1540, %v1315
        %v1542 = vrot.slane %v1317, 6
        %v1543 = vsel %vm1327, %v1542, %v1541
        %v1544 = vrot.slane %v1318, 5
        %v1545 = vsel %vm1330, %v1544, %v1543
        %v1546 = vrot.slane %v1319, 4
        %v1547 = vsel %vm1333, %v1546, %v1545
        %v1548 = vrot.slane %v1320, 3
        %v1549 = vsel %vm1336, %v1548, %v1547
        %v1550 = vrot.slane %v1321, 2
        %v1551 = vsel %vm1339, %v1550, %v1549
        %v1552 = vrot.slane %v1322, 1
        %v1553 = vsel %vm1342, %v1552, %v1551
        %v1554 = vpack.c.b16 %v1357, %v1343
        %v1555 = vpack.c.b16 %v1385, %v1371
        %v1556 = vpack.c.b16 %v1413, %v1399
        %v1557 = vpack.c.b16 %v1441, %v1427
        %v1558 = vpack.c.b16 %v1469, %v1455
        %v1559 = vpack.c.b16 %v1497, %v1483
        %v1560 = vpack.c.b16 %v1525, %v1511
        %v1561 = vpack.c.b16 %v1553, %v1539
        %v1586 = vunpack.c.l.b16 %v461
        %v1587 = vunpack.c.l.b16 %v462
        %v1588 = vunpack.c.l.b16 %v463
        %v1589 = vunpack.c.l.b16 %v464
        %v1590 = vunpack.c.l.b16 %v465
        %v1591 = vunpack.c.l.b16 %v466
        %v1592 = vunpack.c.l.b16 %v467
        %v1593 = vunpack.c.l.b16 %v468
        %v1594 = vunpack.c.l.b16 %v469
        %v1595 = vunpack.c.l.b16 %v470
        %v1596 = vunpack.c.l.b16 %v471
        %v1597 = vunpack.c.l.b16 %v472
        %v1598 = vunpack.c.l.b16 %v473
        %v1599 = vunpack.c.l.b16 %v474
        %v1600 = vunpack.c.l.b16 %v475
        %v1601 = vunpack.c.l.b16 %v476
        %v1602 = vpack.c.b16 %v1587, %v1586
        %v1603 = vpack.c.b16 %v1589, %v1588
        %v1604 = vpack.c.b16 %v1591, %v1590
        %v1605 = vpack.c.b16 %v1593, %v1592
        %v1606 = vpack.c.b16 %v1595, %v1594
        %v1607 = vpack.c.b16 %v1597, %v1596
        %v1608 = vpack.c.b16 %v1599, %v1598
        %v1609 = vpack.c.b16 %v1601, %v1600
        %1618 = vmatprep.subr.bf16.mxu0 0
        %1619 = vmatpush1.bf16.xpose.msra.mxu0 %v1602
        %1620 = vmatprep.subr.bf16.mxu0 0
        %1621 = vmatpush1.bf16.xpose.msra.mxu0 %v1603
        %1622 = vmatprep.subr.bf16.mxu0 0
        %1623 = vmatpush1.bf16.xpose.msra.mxu0 %v1604
        %1624 = vmatprep.subr.bf16.mxu0 0
        %1625 = vmatpush1.bf16.xpose.msra.mxu0 %v1605
        %1626 = vmatprep.subr.bf16.mxu0 0
        %1627 = vmatpush1.bf16.xpose.msra.mxu0 %v1606
        %1628 = vmatprep.subr.bf16.mxu0 0
        %1629 = vmatpush1.bf16.xpose.msra.mxu0 %v1607
        %1630 = vmatprep.subr.bf16.mxu0 0
        %1631 = vmatpush1.bf16.xpose.msra.mxu0 %v1608
        %1632 = vmatprep.subr.bf16.mxu0 0
        %1633 = vmatpush1.bf16.xpose.msra.mxu0 %v1609
        %1634 = vmatprep.subr.bf16.mxu0 0
        %1635 = vmatpush1.bf16.xpose.msra.mxu0 0
        %1636 = vmatprep.subr.bf16.mxu0 0
        %1637 = vmatpush1.bf16.xpose.msra.mxu0 0
        %1638 = vmatprep.subr.bf16.mxu0 0
        %1639 = vmatpush1.bf16.xpose.msra.mxu0 0
        %1640 = vmatprep.subr.bf16.mxu0 0
        %1641 = vmatpush1.bf16.xpose.msra.mxu0 0
        %1642 = vmatprep.subr.bf16.mxu0 0
        %1643 = vmatpush1.bf16.xpose.msra.mxu0 0
        %1644 = vmatprep.subr.bf16.mxu0 0
        %1645 = vmatpush1.bf16.xpose.msra.mxu0 0
        %1646 = vmatprep.subr.bf16.mxu0 0
        %1647 = vmatpush1.bf16.xpose.msra.mxu0 0
        %1648 = vmatprep.subr.bf16.mxu0 0
        %1649 = vmatpush1.bf16.xpose.msra.mxu0 0
        %1650 = vmatprep.mubr.bf16.mxu0 0
        %1651 = vmatmul.mubr.bf16.gmra.mrb[0].mxu0 %v1554
        %v1652 = vpop.f32.mrb[0].mxu0
        %v1653 = vadd.f32 %v809, %v1652
        %v1654 = vpop.f32.mrb[0].mxu0
        %v1655 = vpop.f32.mrb[0].mxu0
        %v1656 = vadd.f32 %v809, %v1655
        %v1657 = vpop.f32.mrb[0].mxu0
        %1658 = vmatprep.mubr.bf16.mxu0 0
        %1659 = vmatmul.mubr.bf16.gmra.mrb[0].mxu0 %v1555
        %v1660 = vpop.f32.mrb[0].mxu0
        %v1661 = vadd.f32 %v809, %v1660
        %v1662 = vpop.f32.mrb[0].mxu0
        %v1663 = vpop.f32.mrb[0].mxu0
        %v1664 = vadd.f32 %v809, %v1663
        %v1665 = vpop.f32.mrb[0].mxu0
        %1666 = vmatprep.mubr.bf16.mxu0 0
        %1667 = vmatmul.mubr.bf16.gmra.mrb[0].mxu0 %v1556
        %v1668 = vpop.f32.mrb[0].mxu0
        %v1669 = vadd.f32 %v809, %v1668
        %v1670 = vpop.f32.mrb[0].mxu0
        %v1671 = vpop.f32.mrb[0].mxu0
        %v1672 = vadd.f32 %v809, %v1671
        %v1673 = vpop.f32.mrb[0].mxu0
        %1674 = vmatprep.mubr.bf16.mxu0 0
        %1675 = vmatmul.mubr.bf16.gmra.mrb[0].mxu0 %v1557
        %v1676 = vpop.f32.mrb[0].mxu0
        %v1677 = vadd.f32 %v809, %v1676
        %v1678 = vpop.f32.mrb[0].mxu0
        %v1679 = vpop.f32.mrb[0].mxu0
        %v1680 = vadd.f32 %v809, %v1679
        %v1681 = vpop.f32.mrb[0].mxu0
        %1682 = vmatprep.mubr.bf16.mxu0 0
        %1683 = vmatmul.mubr.bf16.gmra.mrb[0].mxu0 %v1558
        %v1684 = vpop.f32.mrb[0].mxu0
        %v1685 = vadd.f32 %v809, %v1684
        %v1686 = vpop.f32.mrb[0].mxu0
        %v1687 = vpop.f32.mrb[0].mxu0
        %v1688 = vadd.f32 %v809, %v1687
        %v1689 = vpop.f32.mrb[0].mxu0
        %1690 = vmatprep.mubr.bf16.mxu0 0
        %1691 = vmatmul.mubr.bf16.gmra.mrb[0].mxu0 %v1559
        %v1692 = vpop.f32.mrb[0].mxu0
        %v1693 = vadd.f32 %v809, %v1692
        %v1694 = vpop.f32.mrb[0].mxu0
        %v1695 = vpop.f32.mrb[0].mxu0
        %v1696 = vadd.f32 %v809, %v1695
        %v1697 = vpop.f32.mrb[0].mxu0
        %1698 = vmatprep.mubr.bf16.mxu0 0
        %1699 = vmatmul.mubr.bf16.gmra.mrb[0].mxu0 %v1560
        %v1700 = vpop.f32.mrb[0].mxu0
        %v1701 = vadd.f32 %v809, %v1700
        %v1702 = vpop.f32.mrb[0].mxu0
        %v1703 = vpop.f32.mrb[0].mxu0
        %v1704 = vadd.f32 %v809, %v1703
        %v1705 = vpop.f32.mrb[0].mxu0
        %1706 = vmatprep.mubr.bf16.mxu0 0
        %1707 = vmatmul.mubr.bf16.gmra.mrb[0].mxu0 %v1561
        %v1708 = vpop.f32.mrb[0].mxu0
        %v1709 = vadd.f32 %v809, %v1708
        %v1710 = vpop.f32.mrb[0].mxu0
        %v1711 = vpop.f32.mrb[0].mxu0
        %v1712 = vadd.f32 %v809, %v1711
        %v1713 = vpop.f32.mrb[0].mxu0
        %1714 = vdwg.mxu0
        %1715 = vst [vmem:[%s448] sm:$0xff] %v1653
        %1716 = vst [vmem:[%s448 + $0x8] sm:$0xff] %v1656
        %1717 = vst [vmem:[%s448 + $0x10] sm:$0xff] %v1661
        %1718 = vst [vmem:[%s448 + $0x18] sm:$0xff] %v1664
        %1719 = vst [vmem:[%s448 + $0x20] sm:$0xff] %v1669
        %1720 = vst [vmem:[%s448 + $0x28] sm:$0xff] %v1672
        %1721 = vst [vmem:[%s448 + $0x30] sm:$0xff] %v1677
        %1722 = vst [vmem:[%s448 + $0x38] sm:$0xff] %v1680
        %1723 = vst [vmem:[%s448 + $0x40] sm:$0xff] %v1685
        %1724 = vst [vmem:[%s448 + $0x48] sm:$0xff] %v1688
        %1725 = vst [vmem:[%s448 + $0x50] sm:$0xff] %v1693
        %1726 = vst [vmem:[%s448 + $0x58] sm:$0xff] %v1696
        %1727 = vst [vmem:[%s448 + $0x60] sm:$0xff] %v1701
        %1728 = vst [vmem:[%s448 + $0x68] sm:$0xff] %v1704
        %1729 = vst [vmem:[%s448 + $0x70] sm:$0xff] %v1709
        %1730 = vst [vmem:[%s448 + $0x78] sm:$0xff] %v1712
        %v1731 = vld [vmem:[#allocation2] sm:$0xff]
        %v1732 = vpack.c.bf16 %v1731, %v1731
        %v1733 = vpack.c.bf16 %v1656, %v1653
        %v1734 = vpack.c.bf16 %v1664, %v1661
        %v1735 = vpack.c.bf16 %v1672, %v1669
        %v1736 = vpack.c.bf16 %v1680, %v1677
        %v1737 = vpack.c.bf16 %v1688, %v1685
        %v1738 = vpack.c.bf16 %v1696, %v1693
        %v1739 = vpack.c.bf16 %v1704, %v1701
        %v1740 = vpack.c.bf16 %v1712, %v1709
        %1741 = vmatprep.subr.bf16.mxu0 0
        %1742 = vmatpush1.bf16.xpose.msra.mxu0 %v1733
        %1743 = vmatprep.subr.bf16.mxu0 0
        %1744 = vmatpush1.bf16.xpose.msra.mxu0 %v1734
        %1745 = vmatprep.subr.bf16.mxu0 0
        %1746 = vmatpush1.bf16.xpose.msra.mxu0 %v1735
        %1747 = vmatprep.subr.bf16.mxu0 0
        %1748 = vmatpush1.bf16.xpose.msra.mxu0 %v1736
        %1749 = vmatprep.subr.bf16.mxu0 0
        %1750 = vmatpush1.bf16.xpose.msra.mxu0 %v1737
        %1751 = vmatprep.subr.bf16.mxu0 0
        %1752 = vmatpush1.bf16.xpose.msra.mxu0 %v1738
        %1753 = vmatprep.subr.bf16.mxu0 0
        %1754 = vmatpush1.bf16.xpose.msra.mxu0 %v1739
        %1755 = vmatprep.subr.bf16.mxu0 0
        %1756 = vmatpush1.bf16.xpose.msra.mxu0 %v1740
        %1757 = vmatprep.subr.bf16.mxu0 0
        %1758 = vmatpush1.bf16.xpose.msra.mxu0 0
        %1759 = vmatprep.subr.bf16.mxu0 0
        %1760 = vmatpush1.bf16.xpose.msra.mxu0 0
        %1761 = vmatprep.subr.bf16.mxu0 0
        %1762 = vmatpush1.bf16.xpose.msra.mxu0 0
        %1763 = vmatprep.subr.bf16.mxu0 0
        %1764 = vmatpush1.bf16.xpose.msra.mxu0 0
        %1765 = vmatprep.subr.bf16.mxu0 0
        %1766 = vmatpush1.bf16.xpose.msra.mxu0 0
        %1767 = vmatprep.subr.bf16.mxu0 0
        %1768 = vmatpush1.bf16.xpose.msra.mxu0 0
        %1769 = vmatprep.subr.bf16.mxu0 0
        %1770 = vmatpush1.bf16.xpose.msra.mxu0 0
        %1771 = vmatprep.subr.bf16.mxu0 0
        %1772 = vmatpush1.bf16.xpose.msra.mxu0 0
        %1773 = vmatprep.mubr.bf16.mxu0 0
        %1774 = vmatmul.mubr.bf16.gmra.mrb[0].mxu0 %v1732
        %v1775 = vpop.f32.mrb[0].mxu0
        %v1776 = vadd.f32 0.0, %v1775
        %v1777 = vpop.f32.mrb[0].mxu0
        %v1778 = vpop.f32.mrb[0].mxu0
        %v1779 = vpop.f32.mrb[0].mxu0
        %1780 = vdwg.mxu0
        %1781 = vst [vmem:[%s455] sm:$0xff] %v1776
        %v1782 = vld [vmem:[#allocation3] sm:$0xff]
        %1783 = vmax.xlane.f32.xlu0 %v1776
        %v1784 = vpop.xlane.xlu0 %1783
        %v1785 = vmax.f32 %v1782, %v1784
        %v1786 = vsub.f32 %v1782, %v1785
        %v1787 = vmul.f32 %v1786, 1.442695
        %v1788 = vpow.pop %v1787
        %v1789 = vld [vmem:[#allocation4] sm:$0xff]
        %v1790 = vmul.f32 %v1788, %v1789
        %1792 = vset.pattern.permute.xlu0 0
        %1793 = vperm.xlu0 %1792, %v1785
        %v1794 = vpop.permute.xlu0 %1793
        %v1796 = vsub.f32 %v1776, %v1794
        %v1797 = vmul.f32 %v1796, 1.442695
        %v1798 = vpow.pop %v1797
        %1799 = vadd.xlane.f32.xlu0 %v1798
        %v1800 = vpop.xlane.xlu0 %1799
        %v1801 = vadd.f32 %v1790, %v1800
        %vm1802 = vcmask 7168
        %1803 = vst.msk [vmem:[#allocation4] sm:$0xff] %vm1802, %v1801
        %1804 = vst.msk [vmem:[#allocation3] sm:$0xff] %vm1802, %v1785
        %v1805 = vlaneseq
        %v1806 = vshrl.u32 %v1805, 7
        %v1807 = vlaneseq
        %v1808 = vand.u32 %v1807, 127
        %s1809 = smul.u32 %s28, 128
        %v1810 = vstv %s1809
        %v1811 = vadd.s32 %v1808, %v1810
        %v1812 = vld [vmem:[#allocation5] sm:$0xff]
        %v1813 = vmul.u32 %v1806, 32
        %vm1814 = vcmp.eq.s32.totalorder %v1811, %v1813
        %v1815 = vsel %vm1814, %v1776, 0.0
        %1816 = vadd.xlane.f32.xlu0 %v1815
        %v1817 = vpop.xlane.xlu0 %1816
        %v1818 = vadd.f32 %v1812, %v1817
        %1819 = vst.msk [vmem:[#allocation5] sm:$0xff] %vm1802, %v1818
        %p1820 = scmp.eq.s32.totalorder %s28, 1
        // Predicated region
        $region65: #{tpu_custom_call.1} parent=39 // pred_check
          %p1821 = pneg %p1820
        $region66: #{tpu_custom_call.1} parent=39 // pred_check_branch
          %1823 = sbr.rel (%p1821) target = $region68
        $region67: #{tpu_custom_call.1} parent=39 // pred_region
          %v1824 = vld [vmem:[#allocation3] sm:$0xff]
          %v1825 = vld [vmem:[#allocation4] sm:$0xff]
          %v1826 = vlog2.pop %v1825
          %v1827 = vmul.f32 %v1826, 0.6931472
          %v1828 = vadd.f32 %v1824, %v1827
          %v1829 = vld [vmem:[#allocation5] sm:$0xff]
          %v1830 = vsub.f32 %v1828, %v1829
          %v1831 = vsel %vm1802, %v1830, 0.0
          %1832 = vadd.xlane.f32.xlu0 %v1831
          %v1833 = vpop.xlane.xlu0 %1832
          %v1834 = vrot.slane %v1833, 4
          %v1835 = vadd.f32 %v1833, %v1834
          %v1836 = vrot.slane %v1835, 2
          %v1837 = vadd.f32 %v1835, %v1836
          %v1838 = vrot.slane %v1837, 1
          %v1839 = vadd.f32 %v1837, %v1838
          %s1840 = vtos %v1839
          %s1841 = smul.f32 %s1840, 0.125
          %s1842 = scalar_lea.smem [#allocation20], 0
          %1843 = sst [smem:[%s1842]] %s1841
        $region68: #{tpu_custom_call.1} parent=39 // pred_fallthru
          _
        %s1844 = sand.u32 %s28, 1
        %s1845 = scalar_lea.sflag [#allocation18], %s1844
        %s1846 = sand.u32 %s167, 1
        %s1847 = smul.addr %s1846, 128
        %s1848 = scalar_lea.vmem [#allocation17], %s1847
        %s1849 = sand.u32 %s28, 1
        %s1850 = scalar_lea.sflag [#allocation18], %s1849
        %s1851 = sand.u32 %s193, 1
        %s1852 = smul.addr %s1851, 8
        %s1853 = scalar_lea.vmem [#allocation19], %s1852
        // Predicated region
        $region69: #{tpu_custom_call.1} parent=39 // pred_check
          %p1854 = pneg %p151
        $region70: #{tpu_custom_call.1} parent=39 // pred_check_branch
          %1856 = sbr.rel (%p1854) target = $region72
        $region71: #{tpu_custom_call.1} parent=39 // pred_region
          %s1858 = ssub.s32 128, 128
          %1859 = vsyncadd [#allocation8], %s1858
          %s1861 = sshll.u32 [#allocation16], 4
          %s1862 = int_to_ptr.vmem [resolvable:$true] %s1861
          %1864 = dma.vmem_to_hbm [thread:$0]  %s1862, 128, %s5, [#allocation8]
        $region72: #{tpu_custom_call.1} parent=39 // pred_fallthru
          _
        // Predicated region
        $region73: #{tpu_custom_call.1} parent=39 // pred_check
          %p1865 = pneg %p177
        $region74: #{tpu_custom_call.1} parent=39 // pred_check_branch
          %1867 = sbr.rel (%p1865) target = $region76
        $region75: #{tpu_custom_call.1} parent=39 // pred_region
          %s1868 = smul.u32 16, %s28
          %s1870 = ssub.s32 2048, 2048
          %1871 = vsyncadd %s1845, %s1870
          %s1872 = smul.addr %s1868, 128
          %s1873 = scalar_lea.hbm %s6, %s1872
          %s1874 = sshll.u32 %s1848, 4
          %s1875 = int_to_ptr.vmem [resolvable:$true] %s1874
          %1880 = dma.vmem_to_hbm [thread:$0]  %s1875, 2048, %s1873, %s1845, 128, 128, 8
        $region76: #{tpu_custom_call.1} parent=39 // pred_fallthru
          _
        // Predicated region
        $region77: #{tpu_custom_call.1} parent=39 // pred_check
          %p1881 = pneg %p203
        $region78: #{tpu_custom_call.1} parent=39 // pred_check_branch
          %1883 = sbr.rel (%p1881) target = $region80
        $region79: #{tpu_custom_call.1} parent=39 // pred_region
          %s1885 = ssub.s32 128, 128
          %1886 = vsyncadd %s1850, %s1885
          %s1887 = smul.addr %s28, 128
          %s1888 = scalar_lea.hbm %s7, %s1887
          %s1890 = sshll.u32 %s1853, 4
          %s1891 = int_to_ptr.vmem [resolvable:$true] %s1890
          %1893 = dma.vmem_to_hbm [thread:$0]  %s1891, 128, %s1888, %s1850
        $region80: #{tpu_custom_call.1} parent=39 // pred_fallthru
          _
        // Predicated region
        $region81: #{tpu_custom_call.1} parent=39 // pred_check
          %p1894 = pneg %p224
        $region82: #{tpu_custom_call.1} parent=39 // pred_check_branch
          %1896 = sbr.rel (%p1894) target = $region84
        $region83: #{tpu_custom_call.1} parent=39 // pred_region
          %s1898 = ssub.s32 16, 16
          %1899 = vsyncadd [#allocation9], %s1898
          %1902 = dma.smem_to_hbm [#allocation20], 16, %s8, [#allocation9]
        $region84: #{tpu_custom_call.1} parent=39 // pred_fallthru
          _
        // Predicated region
        $region85: #{tpu_custom_call.1} parent=39 // pred_check
          %p1903 = pneg %p151
        $region86: #{tpu_custom_call.1} parent=39 // pred_check_branch
          %1905 = sbr.rel (%p1903) target = $region88
        $region87: #{tpu_custom_call.1} parent=39 // pred_region
          %1906 = dma.done [#allocation8], 128
        $region88: #{tpu_custom_call.1} parent=39 // pred_fallthru
          _
        // Predicated region
        $region89: #{tpu_custom_call.1} parent=39 // pred_check
          %p1907 = pneg %p224
        $region90: #{tpu_custom_call.1} parent=39 // pred_check_branch
          %1909 = sbr.rel (%p1907) target = $region92
        $region91: #{tpu_custom_call.1} parent=39 // pred_region
          %1910 = dma.done [#allocation9], 16
        $region92: #{tpu_custom_call.1} parent=39 // pred_fallthru
          _
        %1911 = sfence
      $region40: #{tpu_custom_call.1} parent=5 // pred_fallthru
        _
      %p1912 = scmp.le.s32.totalorder 2, %s23
      // Predicated region
      $region93: #{tpu_custom_call.1} parent=5 // pred_check
        %p1913 = pneg %p1912
      $region94: #{tpu_custom_call.1} parent=5 // pred_check_branch
        %1915 = sbr.rel (%p1913) target = $region96
      $region95: #{tpu_custom_call.1} parent=5 // pred_region
        %s1916 = ssub.s32 %s23, 2
        // Predicated region
        $region97: #{tpu_custom_call.1} parent=95 // pred_check
          %p1917 = pneg %p183
        $region98: #{tpu_custom_call.1} parent=95 // pred_check_branch
          %1919 = sbr.rel (%p1917) target = $region100
        $region99: #{tpu_custom_call.1} parent=95 // pred_region
          %s1920 = sand.u32 %s29, 1
          %s1921 = scalar_lea.sflag [#allocation18], %s1920
          %s1922 = sand.u32 %s168, 1
          %s1923 = smul.addr %s1922, 128
          %s1924 = scalar_lea.vmem [#allocation17], %s1923
          %1925 = dma.done %s1921, 2048
        $region100: #{tpu_custom_call.1} parent=95 // pred_fallthru
          _
        // Predicated region
        $region101: #{tpu_custom_call.1} parent=95 // pred_check
          %p1926 = pneg %p209
        $region102: #{tpu_custom_call.1} parent=95 // pred_check_branch
          %1928 = sbr.rel (%p1926) target = $region104
        $region103: #{tpu_custom_call.1} parent=95 // pred_region
          %s1929 = sand.u32 %s29, 1
          %s1930 = scalar_lea.sflag [#allocation18], %s1929
          %s1931 = sand.u32 %s194, 1
          %s1932 = smul.addr %s1931, 8
          %s1933 = scalar_lea.vmem [#allocation19], %s1932
          %1934 = dma.done %s1930, 128
        $region104: #{tpu_custom_call.1} parent=95 // pred_fallthru
          _
      $region96: #{tpu_custom_call.1} parent=5 // pred_fallthru
        _
    $region6: #{tpu_custom_call.1} parent=1 // loop_footer
      %s27 = sadd.s32 1, %s23
    $region7: #{tpu_custom_call.1} parent=1 // loop_footer_branch
      %22 = sbr.rel target = $region3
    $region8: #{tpu_custom_call.1} parent=1 // loop_exit
      _
    %1935 = vsyncpa [#allocation7], 1
    %s1936 = scalar_lea.sflag [#allocation7], 1
    %1937 = vsyncpa %s1936, 1
    %1938 = vsyncpa [#allocation11], 1
    %1939 = vsyncpa [#allocation15], 1
    %1940 = vsyncpa [#allocation8], 1
    %s1941 = scalar_lea.sflag [#allocation8], 1
    %1942 = vsyncpa %s1941, 1
    %1943 = vsyncpa [#allocation18], 1
    %s1944 = scalar_lea.sflag [#allocation18], 1
    %1945 = vsyncpa %s1944, 1
    %1946 = vsyncpa [#allocation9], 1
    %s1947 = scalar_lea.sflag [#allocation9], 1
    %1948 = vsyncpa %s1947, 1

</llo_original>
